<compile_context>
chip_gen: v7x
topology: tpu7x:2x2x1
jax: 0.10.0
libtpu: 0.0.40
codegen_flags: <defaults>
</compile_context>

<pallas_src>
import functools

import jax
import jax.numpy as jnp
import numpy as np
from jax import lax
from jax.experimental import pallas as pl
from jax.experimental.pallas import tpu as pltpu

_LN_EPS = 1e-5


def _layernorm(x, gamma, beta, eps=_LN_EPS):
    # x: (rows, C) f32, gamma/beta: (1, C) f32
    mu = jnp.mean(x, axis=-1, keepdims=True)
    xc = x - mu
    var = jnp.mean(xc * xc, axis=-1, keepdims=True)
    return xc * lax.rsqrt(var + eps) * gamma + beta


def _gelu_tanh(x):
    # TODO(synk): nn.GELU() is the exact erf form; the tanh approximation
    # (<1e-3 abs difference) is used because it maps onto the EUP tanh unit
    # and erf lowering in Mosaic is not guaranteed.
    c = 0.7978845608028654  # sqrt(2/pi)
    return 0.5 * x * (1.0 + jnp.tanh(c * (x + 0.044715 * x * x * x)))


# --------------------------------------------------------------------------
# Stage A: LN1 + fused QKV projection + per-head attention, one batch element
# per grid step.  Output ctx is a lane-dense (1, N, C) bf16 block.
# --------------------------------------------------------------------------
def attn_kernel(x_ref, g1_ref, b1_ref, wqkv_ref, bqkv_ref, ctx_ref, qkv_ref, *,
                head_nums, head_dim, scale, compute_dtype):
    c = head_nums * head_dim

    x = x_ref[0].astype(jnp.float32)                          # (N, C) f32
    xn = _layernorm(x, g1_ref[...], b1_ref[...])
    qkv = jnp.dot(xn.astype(compute_dtype), wqkv_ref[...],
                  preferred_element_type=jnp.float32) + bqkv_ref[...]  # (N, 3C) f32

    # Fold the softmax scale into q once (N*C multiplies, not H*N^2) and keep
    # all attention operands in bf16 so QK^T and PV are MXU-native.
    qkv_ref[:, :c] = (qkv[:, :c] * scale).astype(compute_dtype)
    qkv_ref[:, c:] = qkv[:, c:].astype(compute_dtype)

    # TODO(synk): for very long sequences (N >> 1k) flash-tile over KV blocks
    # with online softmax; per-head (N, N) f32 scores are ~4 MiB at N=1024,
    # which already fits every generation's scoped VMEM budget.
    for h in range(head_nums):
        off = h * head_dim
        q = qkv_ref[:, pl.ds(off, head_dim)]                  # (N, hd) bf16, pre-scaled
        k = qkv_ref[:, pl.ds(c + off, head_dim)]              # (N, hd) bf16
        v = qkv_ref[:, pl.ds(2 * c + off, head_dim)]          # (N, hd) bf16

        s = lax.dot_general(q, k, (((1,), (1,)), ((), ())),
                            preferred_element_type=jnp.float32)        # (N, N) f32
        s = s - jnp.max(s, axis=-1, keepdims=True)
        p = jnp.exp(s)
        # divide -> EUP reciprocal + multiply (frees VPU slots)
        p = p * pl.reciprocal(jnp.sum(p, axis=-1, keepdims=True), approx=True)
        # dropout(p=0.0) is the identity

        ctx = jnp.dot(p.astype(compute_dtype), v,
                      preferred_element_type=jnp.float32)              # (N, hd) f32
        ctx_ref[0, :, pl.ds(off, head_dim)] = ctx.astype(ctx_ref.dtype)


# --------------------------------------------------------------------------
# Stage B: out projection + residual + LayerNorm2 + FFN + residual,
# over (B*N, C) row tiles.
# --------------------------------------------------------------------------
def out_ffn_kernel(ctx_ref, x_ref, wout_ref, bout_ref, g2_ref, be2_ref,
                   w1_ref, fb1_ref, w2_ref, fb2_ref, o_ref, *, compute_dtype):
    ctx = ctx_ref[...]                                        # (tm, C) bf16
    x = x_ref[...].astype(jnp.float32)                        # (tm, C) f32

    attn_out = jnp.dot(ctx, wout_ref[...],
                       preferred_element_type=jnp.float32) + bout_ref[...]
    y = x + attn_out                                          # residual 1 (f32)

    yn = _layernorm(y, g2_ref[...], be2_ref[...])
    h = jnp.dot(yn.astype(compute_dtype), w1_ref[...],
                preferred_element_type=jnp.float32) + fb1_ref[...]     # (tm, F)
    h = _gelu_tanh(h)
    ffn = jnp.dot(h.astype(compute_dtype), w2_ref[...],
                  preferred_element_type=jnp.float32) + fb2_ref[...]   # (tm, C)

    o_ref[...] = (y + ffn).astype(o_ref.dtype)                # residual 2


# --------------------------------------------------------------------------
# Wrapper
# --------------------------------------------------------------------------
def _round_up(v, mult):
    return ((v + mult - 1) // mult) * mult


def _choose_row_tiling(m, target):
    """Row-tile size (multiple of 8) and padded M so the tile always divides."""
    tm = max(_round_up(min(int(target), m), 8), 8)
    m_pad = _round_up(m, tm)
    return tm, m_pad


def _vmem_limit(estimate_bytes):
    # Explicit scoped-VMEM budget: at least 32 MiB (raises v5e's 16 MiB
    # default), capped at 48 MiB so it also fits v7x's 64 MiB physical VMEM.
    return int(min(max(estimate_bytes, 32 * 1024 * 1024), 48 * 1024 * 1024))


def transformer_encoder_layer(x, params, head_nums,
                              compute_dtype=jnp.bfloat16,
                              row_tile=256):
    """x: (B, N, C). Linear weights stored as (in, out)."""
    b, n, c = x.shape
    assert c % head_nums == 0
    hd = c // head_nums
    f = params['w1'].shape[1]
    scale = float(hd ** (-0.5))
    cd = compute_dtype
    cdb = jnp.dtype(cd).itemsize
    xb = x.dtype.itemsize

    # bf16 weights (halved DMA bytes, MXU-native); biases / LN params stay f32.
    wqkv = params['wqkv'].astype(cd)
    wout = params['wout'].astype(cd)
    w1 = params['w1'].astype(cd)
    w2 = params['w2'].astype(cd)
    bqkv = params['bqkv'].reshape(1, 3 * c).astype(jnp.float32)
    bout = params['bout'].reshape(1, c).astype(jnp.float32)
    fb1 = params['b1'].reshape(1, f).astype(jnp.float32)
    fb2 = params['b2'].reshape(1, c).astype(jnp.float32)
    g1 = params['ln1_g'].reshape(1, c).astype(jnp.float32)
    be1 = params['ln1_b'].reshape(1, c).astype(jnp.float32)
    g2 = params['ln2_g'].reshape(1, c).astype(jnp.float32)
    be2 = params['ln2_b'].reshape(1, c).astype(jnp.float32)

    # ---- Stage A: LN1 + QKV + attention (grid over batch) ----
    # TODO(synk): for B=1 on v7x (2 TensorCores) also shard over heads; the
    # (B,) grid is kept here so the ctx output stays a single lane-dense
    # (N, C) block per step.
    est_a = (2 * n * c * (xb + cdb)                 # x in + ctx out blocks (double-buffered)
             + 2 * c * 3 * c * cdb                  # wqkv blocks
             + n * 3 * c * (cdb + 4)                # qkv scratch + f32 temp
             + 4 * n * n * 4                        # per-head score/prob temps
             + (2 << 20))
    ctx = pl.pallas_call(
        functools.partial(attn_kernel, head_nums=head_nums, head_dim=hd,
                          scale=scale, compute_dtype=cd),
        out_shape=jax.ShapeDtypeStruct((b, n, c), cd),        # bf16 intermediate
        grid=(b,),
        in_specs=[pl.BlockSpec((1, n, c), lambda i: (i, 0, 0)),
                  pl.BlockSpec((1, c), lambda i: (0, 0)),
                  pl.BlockSpec((1, c), lambda i: (0, 0)),
                  pl.BlockSpec((c, 3 * c), lambda i: (0, 0)),
                  pl.BlockSpec((1, 3 * c), lambda i: (0, 0))],
        out_specs=pl.BlockSpec((1, n, c), lambda i: (i, 0, 0)),
        scratch_shapes=[pltpu.VMEM((n, 3 * c), cd)],
        compiler_params=pltpu.CompilerParams(
            dimension_semantics=("parallel",),
            vmem_limit_bytes=_vmem_limit(est_a)),
    )(x, g1, be1, wqkv, bqkv)

    # ---- Stage B: out-proj + residual + LN2 + FFN + residual (row tiles) ----
    m = b * n
    # row_tile=512 is a better fit on v6e/v5e (128 MiB VMEM); 256 is the
    # default so the same budget also fits v7x's 64 MiB physical VMEM.
    tm, m_pad = _choose_row_tiling(m, row_tile)
    grid_m = m_pad // tm

    x2d = x.reshape(m, c)                                     # native dtype, no f32 cast
    ctx2d = ctx.reshape(m, c)
    if m_pad != m:
        pad = ((0, m_pad - m), (0, 0))
        x2d = jnp.pad(x2d, pad)
        ctx2d = jnp.pad(ctx2d, pad)

    est_b = (2 * tm * c * (cdb + 2 * xb)            # ctx + x + out row blocks
             + 2 * (c * c + 2 * c * f) * cdb        # wout/w1/w2 blocks
             + 3 * tm * f * 4                       # GELU intermediate temps (f32)
             + 4 * tm * c * 4                       # misc f32 temps
             + (2 << 20))

    row_spec = pl.BlockSpec((tm, c), lambda i: (i, 0))

    def const(shape):
        return pl.BlockSpec(shape, lambda i, _s=shape: (0,) * len(_s))

    out2d = pl.pallas_call(
        functools.partial(out_ffn_kernel, compute_dtype=cd),
        out_shape=jax.ShapeDtypeStruct((m_pad, c), x.dtype),
        grid=(grid_m,),
        in_specs=[row_spec, row_spec,
                  const((c, c)), const((1, c)),
                  const((1, c)), const((1, c)),
                  const((c, f)), const((1, f)),
                  const((f, c)), const((1, c))],
        out_specs=pl.BlockSpec((tm, c), lambda i: (i, 0)),
        compiler_params=pltpu.CompilerParams(
            dimension_semantics=("parallel",),
            vmem_limit_bytes=_vmem_limit(est_b)),
    )(ctx2d, x2d, wout, bout, g2, be2, w1, fb1, w2, fb2)

    if m_pad != m:
        out2d = out2d[:m]
    return out2d.reshape(b, n, c)


# --------------------------------------------------------------------------
# Plain-JAX reference mirroring the PyTorch forward (f32 throughout).
# --------------------------------------------------------------------------
def reference_transformer_encoder_layer(x, params, head_nums):
    b, n, c = x.shape
    hd = c // head_nums
    scale = hd ** (-0.5)

    def layernorm(v, g, be):
        mu = jnp.mean(v, axis=-1, keepdims=True)
        var = jnp.mean((v - mu) ** 2, axis=-1, keepdims=True)
        return (v - mu) / jnp.sqrt(var + _LN_EPS) * g + be

    xn = layernorm(x, params['ln1_g'], params['ln1_b'])
    qkv = jnp.einsum('bnc,cd->bnd', xn, params['wqkv']) + params['bqkv']
    qkv = qkv.reshape(b, n, 3, head_nums, hd).transpose(2, 0, 3, 1, 4)
    q, k, v = qkv[0], qkv[1], qkv[2]                          # (B, H, N, hd)
    attn = jnp.einsum('bhid,bhjd->bhij', q, k) * scale
    attn = jax.nn.softmax(attn, axis=-1)
    ctx = jnp.einsum('bhij,bhjd->bhid', attn, v)
    ctx = ctx.transpose(0, 2, 1, 3).reshape(b, n, c)
    attn_out = jnp.einsum('bnc,cd->bnd', ctx, params['wout']) + params['bout']
    y = x + attn_out
    yn = layernorm(y, params['ln2_g'], params['ln2_b'])
    h = jnp.einsum('bnc,cf->bnf', yn, params['w1']) + params['b1']
    h = jax.nn.gelu(h, approximate=True)      # same tanh formula as the kernel
    ffn = jnp.einsum('bnf,fc->bnc', h, params['w2']) + params['b2']
    return y + ffn


if __name__ == "__main__":
    B, N, C, HEADS, RATIO = 2, 8, 32, 8, 4
    F = C * RATIO

    key = jax.random.PRNGKey(0)
    keys = jax.random.split(key, 13)

    x = jax.random.normal(keys[0], (B, N, C), dtype=jnp.float32)

    def lin_w(k, i, o):
        return jax.random.normal(k, (i, o), dtype=jnp.float32) * 0.05

    def lin_b(k, o):
        return jax.random.normal(k, (o,), dtype=jnp.float32) * 0.05

    params = dict(
        ln1_g=jnp.ones((C,), jnp.float32) + 0.1 * jax.random.normal(keys[1], (C,)),
        ln1_b=0.1 * jax.random.normal(keys[2], (C,)),
        wqkv=lin_w(keys[3], C, 3 * C), bqkv=lin_b(keys[4], 3 * C),
        wout=lin_w(keys[5], C, C), bout=lin_b(keys[6], C),
        ln2_g=jnp.ones((C,), jnp.float32) + 0.1 * jax.random.normal(keys[7], (C,)),
        ln2_b=0.1 * jax.random.normal(keys[8], (C,)),
        w1=lin_w(keys[9], C, F), b1=lin_b(keys[10], F),
        w2=lin_w(keys[11], F, C), b2=lin_b(keys[12], C),
    )

    out = jax.block_until_ready(transformer_encoder_layer(x, params, HEADS))

    ref = reference_transformer_encoder_layer(x, params, HEADS)
    # bf16 matmul operands / bf16 ctx intermediate + approx reciprocal in the
    # softmax (rows sum to 1 only to ~1e-3) vs f32 reference -> loose tol.
    np.testing.assert_allclose(np.asarray(out), np.asarray(ref),
                               rtol=3e-2, atol=3e-2)

    print("KERNEL_OK")
</pallas_src>

<mosaic_0001>
module attributes {stable_mosaic.version = 11 : i64} {
  func.func @attn_kernel(%arg0: i32, %arg1: memref<1x8x32xf32, #tpu.memory_space<vmem>>, %arg2: memref<1x32xf32, #tpu.memory_space<vmem>>, %arg3: memref<1x32xf32, #tpu.memory_space<vmem>>, %arg4: memref<32x96xbf16, #tpu.memory_space<vmem>>, %arg5: memref<1x96xf32, #tpu.memory_space<vmem>>, %arg6: memref<1x8x32xbf16, #tpu.memory_space<vmem>>, %arg7: memref<8x96xbf16, #tpu.memory_space<vmem>>) attributes {dimension_semantics = [#tpu.dimension_semantics<parallel>], iteration_bounds = array<i64: 2>, scalar_prefetch = 0 : i64, scratch_operands = 1 : i64, tpu.core_type = #tpu.core_type<tc>, window_params = [{transform_indices = @transform_0, window_bounds = array<i64: 1, 8, 32>}, {pipeline_mode = #tpu.pipeline_mode<synchronous>, transform_indices = @transform_1, window_bounds = array<i64: 1, 32>}, {pipeline_mode = #tpu.pipeline_mode<synchronous>, transform_indices = @transform_2, window_bounds = array<i64: 1, 32>}, {pipeline_mode = #tpu.pipeline_mode<synchronous>, transform_indices = @transform_3, window_bounds = array<i64: 32, 96>}, {pipeline_mode = #tpu.pipeline_mode<synchronous>, transform_indices = @transform_4, window_bounds = array<i64: 1, 96>}, {transform_indices = @transform_5, window_bounds = array<i64: 1, 8, 32>}]} {
    %c0 = arith.constant 0 : index
    %c0_0 = arith.constant 0 : index
    %c0_1 = arith.constant 0 : index
    %0 = vector.load %arg1[%c0, %c0_0, %c0_1] : memref<1x8x32xf32, #tpu.memory_space<vmem>>, vector<1x8x32xf32>
    %1 = vector.shape_cast %0 : vector<1x8x32xf32> to vector<8x32xf32>
    %c0_2 = arith.constant 0 : index
    %c0_3 = arith.constant 0 : index
    %2 = vector.load %arg2[%c0_2, %c0_3] : memref<1x32xf32, #tpu.memory_space<vmem>>, vector<1x32xf32>
    %c0_4 = arith.constant 0 : index
    %c0_5 = arith.constant 0 : index
    %3 = vector.load %arg3[%c0_4, %c0_5] : memref<1x32xf32, #tpu.memory_space<vmem>>, vector<1x32xf32>
    %cst = arith.constant dense<0.000000e+00> : vector<8xf32>
    %4 = vector.multi_reduction <add>, %1, %cst [1] : vector<8x32xf32> to vector<8xf32>
    %5 = vector.shape_cast %4 : vector<8xf32> to vector<8x1xf32>
    %cst_6 = arith.constant 3.200000e+01 : f32
    %6 = vector.broadcast %cst_6 : f32 to vector<8x1xf32>
    %7 = arith.divf %5, %6 : vector<8x1xf32>
    %8 = vector.broadcast %7 : vector<8x1xf32> to vector<8x32xf32>
    %9 = arith.subf %1, %8 : vector<8x32xf32>
    %10 = arith.mulf %9, %9 : vector<8x32xf32>
    %cst_7 = arith.constant dense<0.000000e+00> : vector<8xf32>
    %11 = vector.multi_reduction <add>, %10, %cst_7 [1] : vector<8x32xf32> to vector<8xf32>
    %12 = vector.shape_cast %11 : vector<8xf32> to vector<8x1xf32>
    %cst_8 = arith.constant 3.200000e+01 : f32
    %13 = vector.broadcast %cst_8 : f32 to vector<8x1xf32>
    %14 = arith.divf %12, %13 : vector<8x1xf32>
    %cst_9 = arith.constant 9.99999974E-6 : f32
    %15 = vector.broadcast %cst_9 : f32 to vector<8x1xf32>
    %16 = arith.addf %14, %15 : vector<8x1xf32>
    %17 = math.rsqrt %16 : vector<8x1xf32>
    %18 = vector.broadcast %17 : vector<8x1xf32> to vector<8x32xf32>
    %19 = arith.mulf %9, %18 : vector<8x32xf32>
    %20 = vector.broadcast %2 : vector<1x32xf32> to vector<8x32xf32>
    %21 = arith.mulf %19, %20 : vector<8x32xf32>
    %22 = vector.broadcast %3 : vector<1x32xf32> to vector<8x32xf32>
    %23 = arith.addf %21, %22 : vector<8x32xf32>
    %24 = arith.truncf %23 : vector<8x32xf32> to vector<8x32xbf16>
    %c0_10 = arith.constant 0 : index
    %c0_11 = arith.constant 0 : index
    %25 = vector.load %arg4[%c0_10, %c0_11] : memref<32x96xbf16, #tpu.memory_space<vmem>>, vector<32x96xbf16>
    %cst_12 = arith.constant dense<0.000000e+00> : vector<8x96xf32>
    %26 = tpu.matmul %24, %25, %cst_12 {dimension_numbers = #tpu.dot_dimension_numbers<[1], [0], [0], [1], [0, 0, 1, 1], [], []>} : vector<8x32xbf16>, vector<32x96xbf16>, vector<8x96xf32> -> vector<8x96xf32>
    %c0_13 = arith.constant 0 : index
    %c0_14 = arith.constant 0 : index
    %27 = vector.load %arg5[%c0_13, %c0_14] : memref<1x96xf32, #tpu.memory_space<vmem>>, vector<1x96xf32>
    %28 = vector.broadcast %27 : vector<1x96xf32> to vector<8x96xf32>
    %29 = arith.addf %26, %28 : vector<8x96xf32>
    %30 = vector.extract_strided_slice %29 {offsets = [0, 0], sizes = [8, 32], strides = [1, 1]} : vector<8x96xf32> to vector<8x32xf32>
    %cst_15 = arith.constant 5.000000e-01 : f32
    %31 = vector.broadcast %cst_15 : f32 to vector<8x32xf32>
    %32 = arith.mulf %30, %31 : vector<8x32xf32>
    %33 = arith.truncf %32 : vector<8x32xf32> to vector<8x32xbf16>
    %c0_16 = arith.constant 0 : index
    %c0_17 = arith.constant 0 : index
    %34 = vector.load %arg7[%c0_16, %c0_17] : memref<8x96xbf16, #tpu.memory_space<vmem>>, vector<8x32xbf16>
    tpu.vector_store %arg7[%c0_16, %c0_17], %33 {strides = array<i32>} : memref<8x96xbf16, #tpu.memory_space<vmem>>, vector<8x32xbf16>,
    %35 = vector.extract_strided_slice %29 {offsets = [0, 32], sizes = [8, 64], strides = [1, 1]} : vector<8x96xf32> to vector<8x64xf32>
    %36 = arith.truncf %35 : vector<8x64xf32> to vector<8x64xbf16>
    %c0_18 = arith.constant 0 : index
    %c32 = arith.constant 32 : index
    %37 = vector.load %arg7[%c0_18, %c32] : memref<8x96xbf16, #tpu.memory_space<vmem>>, vector<8x64xbf16>
    tpu.vector_store %arg7[%c0_18, %c32], %36 {strides = array<i32>} : memref<8x96xbf16, #tpu.memory_space<vmem>>, vector<8x64xbf16>,
    %c0_19 = arith.constant 0 : index
    %c0_20 = arith.constant 0 : index
    %38 = vector.load %arg7[%c0_19, %c0_20] : memref<8x96xbf16, #tpu.memory_space<vmem>>, vector<8x4xbf16>
    %c0_21 = arith.constant 0 : index
    %c32_22 = arith.constant 32 : index
    %39 = vector.load %arg7[%c0_21, %c32_22] : memref<8x96xbf16, #tpu.memory_space<vmem>>, vector<8x4xbf16>
    %c0_23 = arith.constant 0 : index
    %c64 = arith.constant 64 : index
    %40 = vector.load %arg7[%c0_23, %c64] : memref<8x96xbf16, #tpu.memory_space<vmem>>, vector<8x4xbf16>
    %cst_24 = arith.constant dense<0.000000e+00> : vector<8x8xf32>
    %41 = tpu.matmul %38, %39, %cst_24 {dimension_numbers = #tpu.dot_dimension_numbers<[1], [1], [0], [0], [0, 0, 1, 0], [], []>} : vector<8x4xbf16>, vector<8x4xbf16>, vector<8x8xf32> -> vector<8x8xf32>
    %cst_25 = arith.constant dense<0xFF800000> : vector<8xf32>
    %42 = vector.multi_reduction <maximumf>, %41, %cst_25 [1] : vector<8x8xf32> to vector<8xf32>
    %43 = vector.shape_cast %42 : vector<8xf32> to vector<8x1xf32>
    %44 = vector.broadcast %43 : vector<8x1xf32> to vector<8x8xf32>
    %45 = arith.subf %41, %44 : vector<8x8xf32>
    %46 = math.exp %45 : vector<8x8xf32>
    %cst_26 = arith.constant dense<0.000000e+00> : vector<8xf32>
    %47 = vector.multi_reduction <add>, %46, %cst_26 [1] : vector<8x8xf32> to vector<8xf32>
    %48 = vector.shape_cast %47 : vector<8xf32> to vector<8x1xf32>
    %49 = tpu.reciprocal %48 {approx = true} : vector<8x1xf32> -> vector<8x1xf32>
    %50 = vector.broadcast %49 : vector<8x1xf32> to vector<8x8xf32>
    %51 = arith.mulf %46, %50 : vector<8x8xf32>
    %52 = arith.truncf %51 : vector<8x8xf32> to vector<8x8xbf16>
    %cst_27 = arith.constant dense<0.000000e+00> : vector<8x4xf32>
    %53 = tpu.matmul %52, %40, %cst_27 {dimension_numbers = #tpu.dot_dimension_numbers<[1], [0], [0], [1], [0, 0, 1, 1], [], []>} : vector<8x8xbf16>, vector<8x4xbf16>, vector<8x4xf32> -> vector<8x4xf32>
    %54 = arith.truncf %53 : vector<8x4xf32> to vector<8x4xbf16>
    %c0_28 = arith.constant 0 : index
    %c0_29 = arith.constant 0 : index
    %c0_30 = arith.constant 0 : index
    %55 = vector.load %arg6[%c0_28, %c0_29, %c0_30] : memref<1x8x32xbf16, #tpu.memory_space<vmem>>, vector<1x8x4xbf16>
    %56 = vector.shape_cast %55 : vector<1x8x4xbf16> to vector<8x4xbf16>
    %57 = vector.shape_cast %54 : vector<8x4xbf16> to vector<1x8x4xbf16>
    tpu.vector_store %arg6[%c0_28, %c0_29, %c0_30], %57 {strides = array<i32>} : memref<1x8x32xbf16, #tpu.memory_space<vmem>>, vector<1x8x4xbf16>,
    %c0_31 = arith.constant 0 : index
    %c4 = arith.constant 4 : index
    %58 = vector.load %arg7[%c0_31, %c4] : memref<8x96xbf16, #tpu.memory_space<vmem>>, vector<8x4xbf16>
    %c0_32 = arith.constant 0 : index
    %c36 = arith.constant 36 : index
    %59 = vector.load %arg7[%c0_32, %c36] : memref<8x96xbf16, #tpu.memory_space<vmem>>, vector<8x4xbf16>
    %c0_33 = arith.constant 0 : index
    %c68 = arith.constant 68 : index
    %60 = vector.load %arg7[%c0_33, %c68] : memref<8x96xbf16, #tpu.memory_space<vmem>>, vector<8x4xbf16>
    %cst_34 = arith.constant dense<0.000000e+00> : vector<8x8xf32>
    %61 = tpu.matmul %58, %59, %cst_34 {dimension_numbers = #tpu.dot_dimension_numbers<[1], [1], [0], [0], [0, 0, 1, 0], [], []>} : vector<8x4xbf16>, vector<8x4xbf16>, vector<8x8xf32> -> vector<8x8xf32>
    %cst_35 = arith.constant dense<0xFF800000> : vector<8xf32>
    %62 = vector.multi_reduction <maximumf>, %61, %cst_35 [1] : vector<8x8xf32> to vector<8xf32>
    %63 = vector.shape_cast %62 : vector<8xf32> to vector<8x1xf32>
    %64 = vector.broadcast %63 : vector<8x1xf32> to vector<8x8xf32>
    %65 = arith.subf %61, %64 : vector<8x8xf32>
    %66 = math.exp %65 : vector<8x8xf32>
    %cst_36 = arith.constant dense<0.000000e+00> : vector<8xf32>
    %67 = vector.multi_reduction <add>, %66, %cst_36 [1] : vector<8x8xf32> to vector<8xf32>
    %68 = vector.shape_cast %67 : vector<8xf32> to vector<8x1xf32>
    %69 = tpu.reciprocal %68 {approx = true} : vector<8x1xf32> -> vector<8x1xf32>
    %70 = vector.broadcast %69 : vector<8x1xf32> to vector<8x8xf32>
    %71 = arith.mulf %66, %70 : vector<8x8xf32>
    %72 = arith.truncf %71 : vector<8x8xf32> to vector<8x8xbf16>
    %cst_37 = arith.constant dense<0.000000e+00> : vector<8x4xf32>
    %73 = tpu.matmul %72, %60, %cst_37 {dimension_numbers = #tpu.dot_dimension_numbers<[1], [0], [0], [1], [0, 0, 1, 1], [], []>} : vector<8x8xbf16>, vector<8x4xbf16>, vector<8x4xf32> -> vector<8x4xf32>
    %74 = arith.truncf %73 : vector<8x4xf32> to vector<8x4xbf16>
    %c0_38 = arith.constant 0 : index
    %c0_39 = arith.constant 0 : index
    %c4_40 = arith.constant 4 : index
    %75 = vector.load %arg6[%c0_38, %c0_39, %c4_40] : memref<1x8x32xbf16, #tpu.memory_space<vmem>>, vector<1x8x4xbf16>
    %76 = vector.shape_cast %75 : vector<1x8x4xbf16> to vector<8x4xbf16>
    %77 = vector.shape_cast %74 : vector<8x4xbf16> to vector<1x8x4xbf16>
    tpu.vector_store %arg6[%c0_38, %c0_39, %c4_40], %77 {strides = array<i32>} : memref<1x8x32xbf16, #tpu.memory_space<vmem>>, vector<1x8x4xbf16>,
    %c0_41 = arith.constant 0 : index
    %c8 = arith.constant 8 : index
    %78 = vector.load %arg7[%c0_41, %c8] : memref<8x96xbf16, #tpu.memory_space<vmem>>, vector<8x4xbf16>
    %c0_42 = arith.constant 0 : index
    %c40 = arith.constant 40 : index
    %79 = vector.load %arg7[%c0_42, %c40] : memref<8x96xbf16, #tpu.memory_space<vmem>>, vector<8x4xbf16>
    %c0_43 = arith.constant 0 : index
    %c72 = arith.constant 72 : index
    %80 = vector.load %arg7[%c0_43, %c72] : memref<8x96xbf16, #tpu.memory_space<vmem>>, vector<8x4xbf16>
    %cst_44 = arith.constant dense<0.000000e+00> : vector<8x8xf32>
    %81 = tpu.matmul %78, %79, %cst_44 {dimension_numbers = #tpu.dot_dimension_numbers<[1], [1], [0], [0], [0, 0, 1, 0], [], []>} : vector<8x4xbf16>, vector<8x4xbf16>, vector<8x8xf32> -> vector<8x8xf32>
    %cst_45 = arith.constant dense<0xFF800000> : vector<8xf32>
    %82 = vector.multi_reduction <maximumf>, %81, %cst_45 [1] : vector<8x8xf32> to vector<8xf32>
    %83 = vector.shape_cast %82 : vector<8xf32> to vector<8x1xf32>
    %84 = vector.broadcast %83 : vector<8x1xf32> to vector<8x8xf32>
    %85 = arith.subf %81, %84 : vector<8x8xf32>
    %86 = math.exp %85 : vector<8x8xf32>
    %cst_46 = arith.constant dense<0.000000e+00> : vector<8xf32>
    %87 = vector.multi_reduction <add>, %86, %cst_46 [1] : vector<8x8xf32> to vector<8xf32>
    %88 = vector.shape_cast %87 : vector<8xf32> to vector<8x1xf32>
    %89 = tpu.reciprocal %88 {approx = true} : vector<8x1xf32> -> vector<8x1xf32>
    %90 = vector.broadcast %89 : vector<8x1xf32> to vector<8x8xf32>
    %91 = arith.mulf %86, %90 : vector<8x8xf32>
    %92 = arith.truncf %91 : vector<8x8xf32> to vector<8x8xbf16>
    %cst_47 = arith.constant dense<0.000000e+00> : vector<8x4xf32>
    %93 = tpu.matmul %92, %80, %cst_47 {dimension_numbers = #tpu.dot_dimension_numbers<[1], [0], [0], [1], [0, 0, 1, 1], [], []>} : vector<8x8xbf16>, vector<8x4xbf16>, vector<8x4xf32> -> vector<8x4xf32>
    %94 = arith.truncf %93 : vector<8x4xf32> to vector<8x4xbf16>
    %c0_48 = arith.constant 0 : index
    %c0_49 = arith.constant 0 : index
    %c8_50 = arith.constant 8 : index
    %95 = vector.load %arg6[%c0_48, %c0_49, %c8_50] : memref<1x8x32xbf16, #tpu.memory_space<vmem>>, vector<1x8x4xbf16>
    %96 = vector.shape_cast %95 : vector<1x8x4xbf16> to vector<8x4xbf16>
    %97 = vector.shape_cast %94 : vector<8x4xbf16> to vector<1x8x4xbf16>
    tpu.vector_store %arg6[%c0_48, %c0_49, %c8_50], %97 {strides = array<i32>} : memref<1x8x32xbf16, #tpu.memory_space<vmem>>, vector<1x8x4xbf16>,
    %c0_51 = arith.constant 0 : index
    %c12 = arith.constant 12 : index
    %98 = vector.load %arg7[%c0_51, %c12] : memref<8x96xbf16, #tpu.memory_space<vmem>>, vector<8x4xbf16>
    %c0_52 = arith.constant 0 : index
    %c44 = arith.constant 44 : index
    %99 = vector.load %arg7[%c0_52, %c44] : memref<8x96xbf16, #tpu.memory_space<vmem>>, vector<8x4xbf16>
    %c0_53 = arith.constant 0 : index
    %c76 = arith.constant 76 : index
    %100 = vector.load %arg7[%c0_53, %c76] : memref<8x96xbf16, #tpu.memory_space<vmem>>, vector<8x4xbf16>
    %cst_54 = arith.constant dense<0.000000e+00> : vector<8x8xf32>
    %101 = tpu.matmul %98, %99, %cst_54 {dimension_numbers = #tpu.dot_dimension_numbers<[1], [1], [0], [0], [0, 0, 1, 0], [], []>} : vector<8x4xbf16>, vector<8x4xbf16>, vector<8x8xf32> -> vector<8x8xf32>
    %cst_55 = arith.constant dense<0xFF800000> : vector<8xf32>
    %102 = vector.multi_reduction <maximumf>, %101, %cst_55 [1] : vector<8x8xf32> to vector<8xf32>
    %103 = vector.shape_cast %102 : vector<8xf32> to vector<8x1xf32>
    %104 = vector.broadcast %103 : vector<8x1xf32> to vector<8x8xf32>
    %105 = arith.subf %101, %104 : vector<8x8xf32>
    %106 = math.exp %105 : vector<8x8xf32>
    %cst_56 = arith.constant dense<0.000000e+00> : vector<8xf32>
    %107 = vector.multi_reduction <add>, %106, %cst_56 [1] : vector<8x8xf32> to vector<8xf32>
    %108 = vector.shape_cast %107 : vector<8xf32> to vector<8x1xf32>
    %109 = tpu.reciprocal %108 {approx = true} : vector<8x1xf32> -> vector<8x1xf32>
    %110 = vector.broadcast %109 : vector<8x1xf32> to vector<8x8xf32>
    %111 = arith.mulf %106, %110 : vector<8x8xf32>
    %112 = arith.truncf %111 : vector<8x8xf32> to vector<8x8xbf16>
    %cst_57 = arith.constant dense<0.000000e+00> : vector<8x4xf32>
    %113 = tpu.matmul %112, %100, %cst_57 {dimension_numbers = #tpu.dot_dimension_numbers<[1], [0], [0], [1], [0, 0, 1, 1], [], []>} : vector<8x8xbf16>, vector<8x4xbf16>, vector<8x4xf32> -> vector<8x4xf32>
    %114 = arith.truncf %113 : vector<8x4xf32> to vector<8x4xbf16>
    %c0_58 = arith.constant 0 : index
    %c0_59 = arith.constant 0 : index
    %c12_60 = arith.constant 12 : index
    %115 = vector.load %arg6[%c0_58, %c0_59, %c12_60] : memref<1x8x32xbf16, #tpu.memory_space<vmem>>, vector<1x8x4xbf16>
    %116 = vector.shape_cast %115 : vector<1x8x4xbf16> to vector<8x4xbf16>
    %117 = vector.shape_cast %114 : vector<8x4xbf16> to vector<1x8x4xbf16>
    tpu.vector_store %arg6[%c0_58, %c0_59, %c12_60], %117 {strides = array<i32>} : memref<1x8x32xbf16, #tpu.memory_space<vmem>>, vector<1x8x4xbf16>,
    %c0_61 = arith.constant 0 : index
    %c16 = arith.constant 16 : index
    %118 = vector.load %arg7[%c0_61, %c16] : memref<8x96xbf16, #tpu.memory_space<vmem>>, vector<8x4xbf16>
    %c0_62 = arith.constant 0 : index
    %c48 = arith.constant 48 : index
    %119 = vector.load %arg7[%c0_62, %c48] : memref<8x96xbf16, #tpu.memory_space<vmem>>, vector<8x4xbf16>
    %c0_63 = arith.constant 0 : index
    %c80 = arith.constant 80 : index
    %120 = vector.load %arg7[%c0_63, %c80] : memref<8x96xbf16, #tpu.memory_space<vmem>>, vector<8x4xbf16>
    %cst_64 = arith.constant dense<0.000000e+00> : vector<8x8xf32>
    %121 = tpu.matmul %118, %119, %cst_64 {dimension_numbers = #tpu.dot_dimension_numbers<[1], [1], [0], [0], [0, 0, 1, 0], [], []>} : vector<8x4xbf16>, vector<8x4xbf16>, vector<8x8xf32> -> vector<8x8xf32>
    %cst_65 = arith.constant dense<0xFF800000> : vector<8xf32>
    %122 = vector.multi_reduction <maximumf>, %121, %cst_65 [1] : vector<8x8xf32> to vector<8xf32>
    %123 = vector.shape_cast %122 : vector<8xf32> to vector<8x1xf32>
    %124 = vector.broadcast %123 : vector<8x1xf32> to vector<8x8xf32>
    %125 = arith.subf %121, %124 : vector<8x8xf32>
    %126 = math.exp %125 : vector<8x8xf32>
    %cst_66 = arith.constant dense<0.000000e+00> : vector<8xf32>
    %127 = vector.multi_reduction <add>, %126, %cst_66 [1] : vector<8x8xf32> to vector<8xf32>
    %128 = vector.shape_cast %127 : vector<8xf32> to vector<8x1xf32>
    %129 = tpu.reciprocal %128 {approx = true} : vector<8x1xf32> -> vector<8x1xf32>
    %130 = vector.broadcast %129 : vector<8x1xf32> to vector<8x8xf32>
    %131 = arith.mulf %126, %130 : vector<8x8xf32>
    %132 = arith.truncf %131 : vector<8x8xf32> to vector<8x8xbf16>
    %cst_67 = arith.constant dense<0.000000e+00> : vector<8x4xf32>
    %133 = tpu.matmul %132, %120, %cst_67 {dimension_numbers = #tpu.dot_dimension_numbers<[1], [0], [0], [1], [0, 0, 1, 1], [], []>} : vector<8x8xbf16>, vector<8x4xbf16>, vector<8x4xf32> -> vector<8x4xf32>
    %134 = arith.truncf %133 : vector<8x4xf32> to vector<8x4xbf16>
    %c0_68 = arith.constant 0 : index
    %c0_69 = arith.constant 0 : index
    %c16_70 = arith.constant 16 : index
    %135 = vector.load %arg6[%c0_68, %c0_69, %c16_70] : memref<1x8x32xbf16, #tpu.memory_space<vmem>>, vector<1x8x4xbf16>
    %136 = vector.shape_cast %135 : vector<1x8x4xbf16> to vector<8x4xbf16>
    %137 = vector.shape_cast %134 : vector<8x4xbf16> to vector<1x8x4xbf16>
    tpu.vector_store %arg6[%c0_68, %c0_69, %c16_70], %137 {strides = array<i32>} : memref<1x8x32xbf16, #tpu.memory_space<vmem>>, vector<1x8x4xbf16>,
    %c0_71 = arith.constant 0 : index
    %c20 = arith.constant 20 : index
    %138 = vector.load %arg7[%c0_71, %c20] : memref<8x96xbf16, #tpu.memory_space<vmem>>, vector<8x4xbf16>
    %c0_72 = arith.constant 0 : index
    %c52 = arith.constant 52 : index
    %139 = vector.load %arg7[%c0_72, %c52] : memref<8x96xbf16, #tpu.memory_space<vmem>>, vector<8x4xbf16>
    %c0_73 = arith.constant 0 : index
    %c84 = arith.constant 84 : index
    %140 = vector.load %arg7[%c0_73, %c84] : memref<8x96xbf16, #tpu.memory_space<vmem>>, vector<8x4xbf16>
    %cst_74 = arith.constant dense<0.000000e+00> : vector<8x8xf32>
    %141 = tpu.matmul %138, %139, %cst_74 {dimension_numbers = #tpu.dot_dimension_numbers<[1], [1], [0], [0], [0, 0, 1, 0], [], []>} : vector<8x4xbf16>, vector<8x4xbf16>, vector<8x8xf32> -> vector<8x8xf32>
    %cst_75 = arith.constant dense<0xFF800000> : vector<8xf32>
    %142 = vector.multi_reduction <maximumf>, %141, %cst_75 [1] : vector<8x8xf32> to vector<8xf32>
    %143 = vector.shape_cast %142 : vector<8xf32> to vector<8x1xf32>
    %144 = vector.broadcast %143 : vector<8x1xf32> to vector<8x8xf32>
    %145 = arith.subf %141, %144 : vector<8x8xf32>
    %146 = math.exp %145 : vector<8x8xf32>
    %cst_76 = arith.constant dense<0.000000e+00> : vector<8xf32>
    %147 = vector.multi_reduction <add>, %146, %cst_76 [1] : vector<8x8xf32> to vector<8xf32>
    %148 = vector.shape_cast %147 : vector<8xf32> to vector<8x1xf32>
    %149 = tpu.reciprocal %148 {approx = true} : vector<8x1xf32> -> vector<8x1xf32>
    %150 = vector.broadcast %149 : vector<8x1xf32> to vector<8x8xf32>
    %151 = arith.mulf %146, %150 : vector<8x8xf32>
    %152 = arith.truncf %151 : vector<8x8xf32> to vector<8x8xbf16>
    %cst_77 = arith.constant dense<0.000000e+00> : vector<8x4xf32>
    %153 = tpu.matmul %152, %140, %cst_77 {dimension_numbers = #tpu.dot_dimension_numbers<[1], [0], [0], [1], [0, 0, 1, 1], [], []>} : vector<8x8xbf16>, vector<8x4xbf16>, vector<8x4xf32> -> vector<8x4xf32>
    %154 = arith.truncf %153 : vector<8x4xf32> to vector<8x4xbf16>
    %c0_78 = arith.constant 0 : index
    %c0_79 = arith.constant 0 : index
    %c20_80 = arith.constant 20 : index
    %155 = vector.load %arg6[%c0_78, %c0_79, %c20_80] : memref<1x8x32xbf16, #tpu.memory_space<vmem>>, vector<1x8x4xbf16>
    %156 = vector.shape_cast %155 : vector<1x8x4xbf16> to vector<8x4xbf16>
    %157 = vector.shape_cast %154 : vector<8x4xbf16> to vector<1x8x4xbf16>
    tpu.vector_store %arg6[%c0_78, %c0_79, %c20_80], %157 {strides = array<i32>} : memref<1x8x32xbf16, #tpu.memory_space<vmem>>, vector<1x8x4xbf16>,
    %c0_81 = arith.constant 0 : index
    %c24 = arith.constant 24 : index
    %158 = vector.load %arg7[%c0_81, %c24] : memref<8x96xbf16, #tpu.memory_space<vmem>>, vector<8x4xbf16>
    %c0_82 = arith.constant 0 : index
    %c56 = arith.constant 56 : index
    %159 = vector.load %arg7[%c0_82, %c56] : memref<8x96xbf16, #tpu.memory_space<vmem>>, vector<8x4xbf16>
    %c0_83 = arith.constant 0 : index
    %c88 = arith.constant 88 : index
    %160 = vector.load %arg7[%c0_83, %c88] : memref<8x96xbf16, #tpu.memory_space<vmem>>, vector<8x4xbf16>
    %cst_84 = arith.constant dense<0.000000e+00> : vector<8x8xf32>
    %161 = tpu.matmul %158, %159, %cst_84 {dimension_numbers = #tpu.dot_dimension_numbers<[1], [1], [0], [0], [0, 0, 1, 0], [], []>} : vector<8x4xbf16>, vector<8x4xbf16>, vector<8x8xf32> -> vector<8x8xf32>
    %cst_85 = arith.constant dense<0xFF800000> : vector<8xf32>
    %162 = vector.multi_reduction <maximumf>, %161, %cst_85 [1] : vector<8x8xf32> to vector<8xf32>
    %163 = vector.shape_cast %162 : vector<8xf32> to vector<8x1xf32>
    %164 = vector.broadcast %163 : vector<8x1xf32> to vector<8x8xf32>
    %165 = arith.subf %161, %164 : vector<8x8xf32>
    %166 = math.exp %165 : vector<8x8xf32>
    %cst_86 = arith.constant dense<0.000000e+00> : vector<8xf32>
    %167 = vector.multi_reduction <add>, %166, %cst_86 [1] : vector<8x8xf32> to vector<8xf32>
    %168 = vector.shape_cast %167 : vector<8xf32> to vector<8x1xf32>
    %169 = tpu.reciprocal %168 {approx = true} : vector<8x1xf32> -> vector<8x1xf32>
    %170 = vector.broadcast %169 : vector<8x1xf32> to vector<8x8xf32>
    %171 = arith.mulf %166, %170 : vector<8x8xf32>
    %172 = arith.truncf %171 : vector<8x8xf32> to vector<8x8xbf16>
    %cst_87 = arith.constant dense<0.000000e+00> : vector<8x4xf32>
    %173 = tpu.matmul %172, %160, %cst_87 {dimension_numbers = #tpu.dot_dimension_numbers<[1], [0], [0], [1], [0, 0, 1, 1], [], []>} : vector<8x8xbf16>, vector<8x4xbf16>, vector<8x4xf32> -> vector<8x4xf32>
    %174 = arith.truncf %173 : vector<8x4xf32> to vector<8x4xbf16>
    %c0_88 = arith.constant 0 : index
    %c0_89 = arith.constant 0 : index
    %c24_90 = arith.constant 24 : index
    %175 = vector.load %arg6[%c0_88, %c0_89, %c24_90] : memref<1x8x32xbf16, #tpu.memory_space<vmem>>, vector<1x8x4xbf16>
    %176 = vector.shape_cast %175 : vector<1x8x4xbf16> to vector<8x4xbf16>
    %177 = vector.shape_cast %174 : vector<8x4xbf16> to vector<1x8x4xbf16>
    tpu.vector_store %arg6[%c0_88, %c0_89, %c24_90], %177 {strides = array<i32>} : memref<1x8x32xbf16, #tpu.memory_space<vmem>>, vector<1x8x4xbf16>,
    %c0_91 = arith.constant 0 : index
    %c28 = arith.constant 28 : index
    %178 = vector.load %arg7[%c0_91, %c28] : memref<8x96xbf16, #tpu.memory_space<vmem>>, vector<8x4xbf16>
    %c0_92 = arith.constant 0 : index
    %c60 = arith.constant 60 : index
    %179 = vector.load %arg7[%c0_92, %c60] : memref<8x96xbf16, #tpu.memory_space<vmem>>, vector<8x4xbf16>
    %c0_93 = arith.constant 0 : index
    %c92 = arith.constant 92 : index
    %180 = vector.load %arg7[%c0_93, %c92] : memref<8x96xbf16, #tpu.memory_space<vmem>>, vector<8x4xbf16>
    %cst_94 = arith.constant dense<0.000000e+00> : vector<8x8xf32>
    %181 = tpu.matmul %178, %179, %cst_94 {dimension_numbers = #tpu.dot_dimension_numbers<[1], [1], [0], [0], [0, 0, 1, 0], [], []>} : vector<8x4xbf16>, vector<8x4xbf16>, vector<8x8xf32> -> vector<8x8xf32>
    %cst_95 = arith.constant dense<0xFF800000> : vector<8xf32>
    %182 = vector.multi_reduction <maximumf>, %181, %cst_95 [1] : vector<8x8xf32> to vector<8xf32>
    %183 = vector.shape_cast %182 : vector<8xf32> to vector<8x1xf32>
    %184 = vector.broadcast %183 : vector<8x1xf32> to vector<8x8xf32>
    %185 = arith.subf %181, %184 : vector<8x8xf32>
    %186 = math.exp %185 : vector<8x8xf32>
    %cst_96 = arith.constant dense<0.000000e+00> : vector<8xf32>
    %187 = vector.multi_reduction <add>, %186, %cst_96 [1] : vector<8x8xf32> to vector<8xf32>
    %188 = vector.shape_cast %187 : vector<8xf32> to vector<8x1xf32>
    %189 = tpu.reciprocal %188 {approx = true} : vector<8x1xf32> -> vector<8x1xf32>
    %190 = vector.broadcast %189 : vector<8x1xf32> to vector<8x8xf32>
    %191 = arith.mulf %186, %190 : vector<8x8xf32>
    %192 = arith.truncf %191 : vector<8x8xf32> to vector<8x8xbf16>
    %cst_97 = arith.constant dense<0.000000e+00> : vector<8x4xf32>
    %193 = tpu.matmul %192, %180, %cst_97 {dimension_numbers = #tpu.dot_dimension_numbers<[1], [0], [0], [1], [0, 0, 1, 1], [], []>} : vector<8x8xbf16>, vector<8x4xbf16>, vector<8x4xf32> -> vector<8x4xf32>
    %194 = arith.truncf %193 : vector<8x4xf32> to vector<8x4xbf16>
    %c0_98 = arith.constant 0 : index
    %c0_99 = arith.constant 0 : index
    %c28_100 = arith.constant 28 : index
    %195 = vector.load %arg6[%c0_98, %c0_99, %c28_100] : memref<1x8x32xbf16, #tpu.memory_space<vmem>>, vector<1x8x4xbf16>
    %196 = vector.shape_cast %195 : vector<1x8x4xbf16> to vector<8x4xbf16>
    %197 = vector.shape_cast %194 : vector<8x4xbf16> to vector<1x8x4xbf16>
    tpu.vector_store %arg6[%c0_98, %c0_99, %c28_100], %197 {strides = array<i32>} : memref<1x8x32xbf16, #tpu.memory_space<vmem>>, vector<1x8x4xbf16>,
    return
  }
  func.func @transform_0(%arg0: i32) -> (i32, i32, i32) {
    %c0_i32 = arith.constant 0 : i32
    %c0_i32_0 = arith.constant 0 : i32
    %c0_i32_1 = arith.constant 0 : i32
    return %arg0, %c0_i32, %c0_i32_0 : i32, i32, i32
  }
  func.func @transform_1(%arg0: i32) -> (i32, i32) {
    %c0_i32 = arith.constant 0 : i32
    %c0_i32_0 = arith.constant 0 : i32
    %c0_i32_1 = arith.constant 0 : i32
    return %c0_i32, %c0_i32_0 : i32, i32
  }
  func.func @transform_2(%arg0: i32) -> (i32, i32) {
    %c0_i32 = arith.constant 0 : i32
    %c0_i32_0 = arith.constant 0 : i32
    %c0_i32_1 = arith.constant 0 : i32
    return %c0_i32, %c0_i32_0 : i32, i32
  }
  func.func @transform_3(%arg0: i32) -> (i32, i32) {
    %c0_i32 = arith.constant 0 : i32
    %c0_i32_0 = arith.constant 0 : i32
    %c0_i32_1 = arith.constant 0 : i32
    return %c0_i32, %c0_i32_0 : i32, i32
  }
  func.func @transform_4(%arg0: i32) -> (i32, i32) {
    %c0_i32 = arith.constant 0 : i32
    %c0_i32_0 = arith.constant 0 : i32
    %c0_i32_1 = arith.constant 0 : i32
    return %c0_i32, %c0_i32_0 : i32, i32
  }
  func.func @transform_5(%arg0: i32) -> (i32, i32, i32) {
    %c0_i32 = arith.constant 0 : i32
    %c0_i32_0 = arith.constant 0 : i32
    %c0_i32_1 = arith.constant 0 : i32
    return %arg0, %c0_i32, %c0_i32_0 : i32, i32, i32
  }
}

</mosaic_0001>

<llo_original>
// kernel: tpu_custom_call.1
$region0: #{tpu_custom_call.1}
  #allocation0 [shape = 'u32[]', space=smem, size = 0x4, offset = 0x4, fixed_abs, tag = 'smem constant byte address 0x4 - core index']
  #allocation1 [shape = 'u32[144,128]{1,0:T(1,128)}', space=vmem, size = 0x12000, scoped, tag = 'internal scratch']
  #allocation2 [shape = 'bf16[8,96]{1,0:T(8,128)(2,1)}', space=vmem, size = 0x800, scoped, tag = 'scratch operand']
  %s0 = inlined_call_operand.hbm [shape: f32[2,8,32], index: 0, kind: input, shape index: {}]
  %s1 = inlined_call_operand.vmem [shape: f32[1,32], index: 1, kind: input, shape index: {}]
  %s2 = inlined_call_operand.vmem [shape: f32[1,32], index: 2, kind: input, shape index: {}]
  %s3 = inlined_call_operand.hbm [shape: bf16[32,96], index: 3, kind: input, shape index: {}]
  %s4 = inlined_call_operand.vmem [shape: f32[1,96], index: 4, kind: input, shape index: {}]
  %s5 = inlined_call_operand.hbm [shape: bf16[2,8,32], index: 5, kind: output, shape index: {}]
  %s6 = sld [smem:[#allocation0]]
  $region61: #{tpu_custom_call.1} parent=0
    _
  %s8 = ssub.s32 1, %s6
  %s9 = scalar_select 0, %s8, %s6
  $region1: #{tpu_custom_call.1} parent=0
    #allocation3 [shape = 'u8[8192]{0}', space=vmem, size = 0x2000, scoped, tag = 'input window, operand 0']
    #allocation4 [shape = 's32[2]{0}', space=sflag, size = 0x8, scoped, tag = 'scoped memory for tpu_custom_call.1']
    #allocation5 [shape = 's32[2]{0}', space=sflag, size = 0x8, scoped, tag = 'scoped memory for tpu_custom_call.1']
    #allocation6 [shape = 'u8[8192]{0}', space=vmem, size = 0x2000, scoped, tag = 'input window, operand 3, single buffered']
    #allocation7 [shape = 's32[1]{0}', space=sflag, size = 0x4, scoped, tag = 'scoped memory for tpu_custom_call.1']
    #allocation8 [shape = 'u8[4096]{0}', space=vmem, size = 0x1000, scoped, tag = 'output window, operand 0']
    %10 = vsyncpa [#allocation4], 0
    %s11 = scalar_lea.sflag [#allocation4], 1
    %12 = vsyncpa %s11, 0
    %13 = vsyncpa [#allocation7], 0
    %14 = vsyncpa [#allocation5], 0
    %s15 = scalar_lea.sflag [#allocation5], 1
    %16 = vsyncpa %s15, 0
    loop: start=0, step=1, limit=4
    $region2: #{tpu_custom_call.1} parent=1 // loop_pre_header
      _
    $region3: #{tpu_custom_call.1} parent=1 // loop_header
      %s18 = sphi 0, %s22
      %p19 = scmp.ge.s32.totalorder %s18, 4
      %s28 = sphi 0, %s30
      %s31 = sphi 0, %s28
      %s32 = sphi 0, %s31
      %s48 = sphi 0, %s32
      %s52 = sphi 0, %s52
      %s54 = sphi 0, %s52
      %s55 = sphi 0, %s54
      %s69 = sphi 0, %s55
      %s73 = sphi 0, %s73
      %s75 = sphi 0, %s73
      %s76 = sphi 0, %s75
      %s90 = sphi 0, %s76
      %s94 = sphi 0, %s94
      %s96 = sphi 0, %s94
      %s97 = sphi 0, %s96
      %s111 = sphi 0, %s97
      %s115 = sphi 0, %s115
      %s117 = sphi 0, %s115
      %s118 = sphi 0, %s117
      %s132 = sphi 0, %s118
      %s138 = sphi 0, %s140
      %s141 = sphi 0, %s138
      %s142 = sphi 0, %s141
      %s158 = sphi 0, %s142
    $region4: #{tpu_custom_call.1} parent=1 // loop_header_branch
      %21 = sbr.rel (%p19) target = $region8
    $region5: #{tpu_custom_call.1} parent=1 // loop_body
      %s23 = ssub.s32 %s18, 1
      %s24 = ssub.s32 %s18, 2
      %s25 = sadd.s32 %s18, 1
      %s26 = ssub.s32 %s18, %s25
      %p27 = scmp.eq.s32.totalorder %s26, 0
      %s29 = sadd.s32 %s28, 1
      %s30 = scalar_select %p27, %s28, %s29
      %p33 = pneg %p27
      %p34 = scmp.eq.s32.totalorder %s18, 1
      %p35 = por %p33, %p34
      %p36 = scmp.ne.s32.totalorder %s28, %s31
      %p37 = scmp.eq.s32.totalorder %s18, 0
      %p38 = por %p36, %p37
      %p39 = scmp.ne.s32.totalorder %s28, %s31
      %p40 = scmp.eq.s32.totalorder %s23, 1
      %p41 = por %p39, %p40
      %p42 = scmp.ne.s32.totalorder %s31, %s32
      %p43 = scmp.eq.s32.totalorder %s23, 0
      %p44 = por %p42, %p43
      %p45 = scmp.ne.s32.totalorder %s31, %s32
      %p46 = scmp.eq.s32.totalorder %s24, 1
      %p47 = por %p45, %p46
      %p49 = scmp.ne.s32.totalorder %s32, %s48
      %p50 = scmp.eq.s32.totalorder %s24, 0
      %p51 = por %p49, %p50
      %s53 = sadd.s32 %s52, 1
      %p56 = scmp.eq.s32.totalorder %s18, 1
      %p57 = scmp.ne.s32.totalorder %s52, %s54
      %p58 = scmp.eq.s32.totalorder %s18, 0
      %p59 = por %p57, %p58
      %p60 = scmp.ne.s32.totalorder %s52, %s54
      %p61 = scmp.eq.s32.totalorder %s23, 1
      %p62 = por %p60, %p61
      %p63 = scmp.ne.s32.totalorder %s54, %s55
      %p64 = scmp.eq.s32.totalorder %s23, 0
      %p65 = por %p63, %p64
      %p66 = scmp.ne.s32.totalorder %s54, %s55
      %p67 = scmp.eq.s32.totalorder %s24, 1
      %p68 = por %p66, %p67
      %p70 = scmp.ne.s32.totalorder %s55, %s69
      %p71 = scmp.eq.s32.totalorder %s24, 0
      %p72 = por %p70, %p71
      %s74 = sadd.s32 %s73, 1
      %p77 = scmp.eq.s32.totalorder %s18, 1
      %p78 = scmp.ne.s32.totalorder %s73, %s75
      %p79 = scmp.eq.s32.totalorder %s18, 0
      %p80 = por %p78, %p79
      %p81 = scmp.ne.s32.totalorder %s73, %s75
      %p82 = scmp.eq.s32.totalorder %s23, 1
      %p83 = por %p81, %p82
      %p84 = scmp.ne.s32.totalorder %s75, %s76
      %p85 = scmp.eq.s32.totalorder %s23, 0
      %p86 = por %p84, %p85
      %p87 = scmp.ne.s32.totalorder %s75, %s76
      %p88 = scmp.eq.s32.totalorder %s24, 1
      %p89 = por %p87, %p88
      %p91 = scmp.ne.s32.totalorder %s76, %s90
      %p92 = scmp.eq.s32.totalorder %s24, 0
      %p93 = por %p91, %p92
      %s95 = sadd.s32 %s94, 1
      %p98 = scmp.eq.s32.totalorder %s18, 1
      %p99 = scmp.ne.s32.totalorder %s94, %s96
      %p100 = scmp.eq.s32.totalorder %s18, 0
      %p101 = por %p99, %p100
      %p102 = scmp.ne.s32.totalorder %s94, %s96
      %p103 = scmp.eq.s32.totalorder %s23, 1
      %p104 = por %p102, %p103
      %p105 = scmp.ne.s32.totalorder %s96, %s97
      %p106 = scmp.eq.s32.totalorder %s23, 0
      %p107 = por %p105, %p106
      %p108 = scmp.ne.s32.totalorder %s96, %s97
      %p109 = scmp.eq.s32.totalorder %s24, 1
      %p110 = por %p108, %p109
      %p112 = scmp.ne.s32.totalorder %s97, %s111
      %p113 = scmp.eq.s32.totalorder %s24, 0
      %p114 = por %p112, %p113
      %s116 = sadd.s32 %s115, 1
      %p119 = scmp.eq.s32.totalorder %s18, 1
      %p120 = scmp.ne.s32.totalorder %s115, %s117
      %p121 = scmp.eq.s32.totalorder %s18, 0
      %p122 = por %p120, %p121
      %p123 = scmp.ne.s32.totalorder %s115, %s117
      %p124 = scmp.eq.s32.totalorder %s23, 1
      %p125 = por %p123, %p124
      %p126 = scmp.ne.s32.totalorder %s117, %s118
      %p127 = scmp.eq.s32.totalorder %s23, 0
      %p128 = por %p126, %p127
      %p129 = scmp.ne.s32.totalorder %s117, %s118
      %p130 = scmp.eq.s32.totalorder %s24, 1
      %p131 = por %p129, %p130
      %p133 = scmp.ne.s32.totalorder %s118, %s132
      %p134 = scmp.eq.s32.totalorder %s24, 0
      %p135 = por %p133, %p134
      %s136 = ssub.s32 %s18, %s25
      %p137 = scmp.eq.s32.totalorder %s136, 0
      %s139 = sadd.s32 %s138, 1
      %s140 = scalar_select %p137, %s138, %s139
      %p143 = pneg %p137
      %p144 = scmp.eq.s32.totalorder %s18, 1
      %p145 = por %p143, %p144
      %p146 = scmp.ne.s32.totalorder %s138, %s141
      %p147 = scmp.eq.s32.totalorder %s18, 0
      %p148 = por %p146, %p147
      %p149 = scmp.ne.s32.totalorder %s138, %s141
      %p150 = scmp.eq.s32.totalorder %s23, 1
      %p151 = por %p149, %p150
      %p152 = scmp.ne.s32.totalorder %s141, %s142
      %p153 = scmp.eq.s32.totalorder %s23, 0
      %p154 = por %p152, %p153
      %p155 = scmp.ne.s32.totalorder %s141, %s142
      %p156 = scmp.eq.s32.totalorder %s24, 1
      %p157 = por %p155, %p156
      %p159 = scmp.ne.s32.totalorder %s142, %s158
      %p160 = scmp.eq.s32.totalorder %s24, 0
      %p161 = por %p159, %p160
      %p162 = scmp.le.s32.totalorder 1, %s18
      %p163 = scmp.lt.s32.totalorder %s18, 3
      %p164 = pnand %p162, %p163
      %p165 = pneg %p164
      // Predicated region
      $region9: #{tpu_custom_call.1} parent=5 // pred_check
        _
      $region10: #{tpu_custom_call.1} parent=5 // pred_check_branch
        %167 = sbr.rel (%p164) target = $region12
      $region11: #{tpu_custom_call.1} parent=5 // pred_region
        %s168 = ssub.s32 %s18, 1
        // Predicated region
        $region13: #{tpu_custom_call.1} parent=11 // pred_check
          %p169 = pneg %p65
        $region14: #{tpu_custom_call.1} parent=11 // pred_check_branch
          %171 = sbr.rel (%p169) target = $region16
        $region15: #{tpu_custom_call.1} parent=11 // pred_region
          _
        $region16: #{tpu_custom_call.1} parent=11 // pred_fallthru
          _
        // Predicated region
        $region17: #{tpu_custom_call.1} parent=11 // pred_check
          %p172 = pneg %p86
        $region18: #{tpu_custom_call.1} parent=11 // pred_check_branch
          %174 = sbr.rel (%p172) target = $region20
        $region19: #{tpu_custom_call.1} parent=11 // pred_region
          _
        $region20: #{tpu_custom_call.1} parent=11 // pred_fallthru
          _
        // Predicated region
        $region21: #{tpu_custom_call.1} parent=11 // pred_check
          %p175 = pneg %p107
        $region22: #{tpu_custom_call.1} parent=11 // pred_check_branch
          %177 = sbr.rel (%p175) target = $region24
        $region23: #{tpu_custom_call.1} parent=11 // pred_region
          %s179 = ssub.s32 256, 256
          %180 = vsyncadd [#allocation7], %s179
          %s181 = sshll.u32 [#allocation6], 4
          %s182 = int_to_ptr.vmem [resolvable:$true] %s181
          %187 = dma.hbm_to_vmem [thread:$0]  %s3, 256, %s182, [#allocation7], 64, 64, 4
        $region24: #{tpu_custom_call.1} parent=11 // pred_fallthru
          _
        // Predicated region
        $region25: #{tpu_custom_call.1} parent=11 // pred_check
          %p188 = pneg %p128
        $region26: #{tpu_custom_call.1} parent=11 // pred_check_branch
          %190 = sbr.rel (%p188) target = $region28
        $region27: #{tpu_custom_call.1} parent=11 // pred_region
          _
        $region28: #{tpu_custom_call.1} parent=11 // pred_fallthru
          _
      $region12: #{tpu_custom_call.1} parent=5 // pred_fallthru
        _
      %p191 = scmp.lt.s32.totalorder %s18, 2
      // Predicated region
      $region29: #{tpu_custom_call.1} parent=5 // pred_check
        %p192 = pneg %p191
      $region30: #{tpu_custom_call.1} parent=5 // pred_check_branch
        %194 = sbr.rel (%p192) target = $region32
      $region31: #{tpu_custom_call.1} parent=5 // pred_region
        // Predicated region
        $region33: #{tpu_custom_call.1} parent=31 // pred_check
          %p195 = pneg %p38
        $region34: #{tpu_custom_call.1} parent=31 // pred_check_branch
          %197 = sbr.rel (%p195) target = $region36
        $region35: #{tpu_custom_call.1} parent=31 // pred_region
          %s198 = sand.u32 %s28, 1
          %s199 = scalar_lea.sflag [#allocation4], %s198
          %s200 = sand.u32 %s28, 1
          %s201 = smul.addr %s200, 8
          %s202 = scalar_lea.vmem [#allocation3], %s201
          %s204 = ssub.s32 128, 128
          %205 = vsyncadd %s199, %s204
          %s206 = smul.addr %s18, 128
          %s207 = scalar_lea.hbm %s0, %s206
          %s209 = sshll.u32 %s202, 4
          %s210 = int_to_ptr.vmem [resolvable:$true] %s209
          %212 = dma.hbm_to_vmem [thread:$0]  %s207, 128, %s210, %s199
        $region36: #{tpu_custom_call.1} parent=31 // pred_fallthru
          _
      $region32: #{tpu_custom_call.1} parent=5 // pred_fallthru
        _
      %p213 = scmp.le.s32.totalorder 1, %s18
      %p214 = scmp.lt.s32.totalorder %s18, 3
      %p215 = pnand %p213, %p214
      %p216 = pneg %p215
      // Predicated region
      $region37: #{tpu_custom_call.1} parent=5 // pred_check
        _
      $region38: #{tpu_custom_call.1} parent=5 // pred_check_branch
        %218 = sbr.rel (%p215) target = $region40
      $region39: #{tpu_custom_call.1} parent=5 // pred_region
        %s219 = ssub.s32 %s18, 1
        %s220 = sand.u32 %s31, 1
        %s221 = scalar_lea.sflag [#allocation4], %s220
        %s222 = sand.u32 %s31, 1
        %s223 = smul.addr %s222, 8
        %s224 = scalar_lea.vmem [#allocation3], %s223
        // Predicated region
        $region41: #{tpu_custom_call.1} parent=39 // pred_check
          %p225 = pneg %p44
        $region42: #{tpu_custom_call.1} parent=39 // pred_check_branch
          %227 = sbr.rel (%p225) target = $region44
        $region43: #{tpu_custom_call.1} parent=39 // pred_region
          %228 = dma.done %s221, 128
        $region44: #{tpu_custom_call.1} parent=39 // pred_fallthru
          _
        // Predicated region
        $region45: #{tpu_custom_call.1} parent=39 // pred_check
          %p229 = pneg %p107
        $region46: #{tpu_custom_call.1} parent=39 // pred_check_branch
          %231 = sbr.rel (%p229) target = $region48
        $region47: #{tpu_custom_call.1} parent=39 // pred_region
          %232 = dma.done [#allocation7], 256
        $region48: #{tpu_custom_call.1} parent=39 // pred_fallthru
          _
        %s233 = sand.u32 %s31, 1
        %s234 = scalar_lea.sflag [#allocation4], %s233
        %s235 = sand.u32 %s31, 1
        %s236 = smul.addr %s235, 8
        %s237 = scalar_lea.vmem [#allocation3], %s236
        %p238 = pneg %p44
        %p239 = pneg %p41
        %p240 = pneg %p65
        %p241 = pneg %p62
        %p242 = pneg %p86
        %p243 = pneg %p83
        %p244 = pneg %p107
        %p245 = pneg %p104
        %p246 = pneg %p128
        %p247 = pneg %p125
        %p248 = pneg %p154
        %p249 = pneg %p151
        %s250 = sand.u32 %s141, 1
        %s251 = scalar_lea.sflag [#allocation5], %s250
        %s252 = sand.u32 %s141, 1
        %s253 = smul.addr %s252, 4
        %s254 = scalar_lea.vmem [#allocation8], %s253
        %v256 = vld [vmem:[%s224] sm:$0xff]
        %v257 = vld [vmem:[%s1] sm:$0x1]
        %v258 = vld [vmem:[%s2] sm:$0x1]
        %vm259 = vcmask 261120
        %v260 = vsel %vm259, %v256, 0.0
        %261 = vadd.xlane.f32.xlu0 %v260
        %v262 = vpop.xlane.xlu0 %261
        %v263 = vrcp.pop 32.0
        %v264 = vmul.f32 %v262, %v263
        %v265 = vsub.f32 %v256, %v264
        %v266 = vmul.f32 %v265, %v265
        %v267 = vsel %vm259, %v266, 0.0
        %268 = vadd.xlane.f32.xlu0 %v267
        %v269 = vpop.xlane.xlu0 %268
        %v270 = vmul.f32 %v269, %v263
        %v271 = vadd.f32 %v270, 1e-05
        %v272 = vrsqrt.pop %v271
        %v273 = vmul.f32 %v265, %v272
        %v275 = vlaneseq
        %v276 = vshrl.u32 %v275, 7
        %v277 = vsub.s32 0, %v276
        %v278 = vrot.slane %v257, %v277
        %v280 = vmul.f32 %v273, %v278
        %v282 = vlaneseq
        %v283 = vshrl.u32 %v282, 7
        %v284 = vsub.s32 0, %v283
        %v285 = vrot.slane %v258, %v284
        %v287 = vadd.f32 %v280, %v285
        %v288 = vpack.c.bf16 %v287, %v287
        %v289 = vld [vmem:[#allocation6] sm:$0xf]
        %v290 = vld [vmem:[#allocation6 + $0x4] sm:$0xf]
        %v291 = vld [vmem:[#allocation6 + $0x8] sm:$0xf]
        %v292 = vld [vmem:[#allocation6 + $0xc] sm:$0xf]
        %v293 = vld [vmem:[%s4] sm:$0x1]
        %v295 = vlaneseq
        %v296 = vshrl.u32 %v295, 7
        %v297 = vsub.s32 0, %v296
        %v298 = vrot.slane %v293, %v297
        %v304 = vunpack.c.l.b16 %v289
        %v305 = vunpack.c.l.b16 %v290
        %v306 = vunpack.c.l.b16 %v291
        %v307 = vunpack.c.l.b16 %v292
        %v308 = vpack.c.b16 %v305, %v304
        %v309 = vpack.c.b16 %v307, %v306
        %v313 = vsel %vm259, %v288, 0
        %315 = vmatprep.subr.bf16.mxu0 0
        %316 = vmatpush1.bf16.msra.mxu0 %v308
        %317 = vmatprep.subr.bf16.mxu0 0
        %318 = vmatpush1.bf16.msra.mxu0 %v309
        %319 = vmatprep.subr.bf16.mxu0 0
        %320 = vmatpush1.bf16.msra.mxu0 0
        %321 = vmatprep.subr.bf16.mxu0 0
        %322 = vmatpush1.bf16.msra.mxu0 0
        %323 = vmatprep.subr.bf16.mxu0 0
        %324 = vmatpush1.bf16.msra.mxu0 0
        %325 = vmatprep.subr.bf16.mxu0 0
        %326 = vmatpush1.bf16.msra.mxu0 0
        %327 = vmatprep.subr.bf16.mxu0 0
        %328 = vmatpush1.bf16.msra.mxu0 0
        %329 = vmatprep.subr.bf16.mxu0 0
        %330 = vmatpush1.bf16.msra.mxu0 0
        %331 = vmatprep.subr.bf16.mxu0 0
        %332 = vmatpush1.bf16.msra.mxu0 0
        %333 = vmatprep.subr.bf16.mxu0 0
        %334 = vmatpush1.bf16.msra.mxu0 0
        %335 = vmatprep.subr.bf16.mxu0 0
        %336 = vmatpush1.bf16.msra.mxu0 0
        %337 = vmatprep.subr.bf16.mxu0 0
        %338 = vmatpush1.bf16.msra.mxu0 0
        %339 = vmatprep.subr.bf16.mxu0 0
        %340 = vmatpush1.bf16.msra.mxu0 0
        %341 = vmatprep.subr.bf16.mxu0 0
        %342 = vmatpush1.bf16.msra.mxu0 0
        %343 = vmatprep.subr.bf16.mxu0 0
        %344 = vmatpush1.bf16.msra.mxu0 0
        %345 = vmatprep.subr.bf16.mxu0 0
        %346 = vmatpush1.bf16.msra.mxu0 0
        %347 = vmatprep.mubr.bf16.mxu0 0
        %348 = vmatmul.mubr.bf16.gmra.mrb[0].mxu0 %v313
        %v349 = vpop.f32.mrb[0].mxu0
        %v350 = vadd.f32 %v298, %v349
        %v351 = vpop.f32.mrb[0].mxu0
        %v352 = vpop.f32.mrb[0].mxu0
        %v353 = vpop.f32.mrb[0].mxu0
        %354 = vdwg.mxu0
        %v355 = vmul.f32 %v350, 0.5
        %v356 = vpack.c.bf16 %v355, %v355
        %vm357 = vcmask 257024
        %358 = vst.msk [vmem:[#allocation2] sm:$0xf] %vm357, %v356
        %v359 = vpack.c.bf16 %v350, %v350
        %vm360 = vcmask 781568
        %361 = vst.msk [vmem:[#allocation2] sm:$0xf] %vm360, %v359
        %v362 = vld [vmem:[#allocation2] sm:$0xf]
        %v364 = vunpack.c.l.b16 %v362
        %v365 = vpack.c.b16 %v364, %v364
        %366 = vrot.lane.b32.xlu0 %v365, 96
        %v367 = vpop.permute.xlu0 %366
        %vm368 = vcmask 31744
        %v370 = vsel %vm368, %v362, 0
        %v373 = vsel %vm368, %v367, 0
        %375 = vmatprep.subr.bf16.mxu0 0
        %376 = vmatpush1.bf16.xpose.msra.mxu0 %v373
        %377 = vmatprep.subr.bf16.mxu0 0
        %378 = vmatpush1.bf16.xpose.msra.mxu0 0
        %379 = vmatprep.subr.bf16.mxu0 0
        %380 = vmatpush1.bf16.xpose.msra.mxu0 0
        %381 = vmatprep.subr.bf16.mxu0 0
        %382 = vmatpush1.bf16.xpose.msra.mxu0 0
        %383 = vmatprep.subr.bf16.mxu0 0
        %384 = vmatpush1.bf16.xpose.msra.mxu0 0
        %385 = vmatprep.subr.bf16.mxu0 0
        %386 = vmatpush1.bf16.xpose.msra.mxu0 0
        %387 = vmatprep.subr.bf16.mxu0 0
        %388 = vmatpush1.bf16.xpose.msra.mxu0 0
        %389 = vmatprep.subr.bf16.mxu0 0
        %390 = vmatpush1.bf16.xpose.msra.mxu0 0
        %391 = vmatprep.subr.bf16.mxu0 0
        %392 = vmatpush1.bf16.xpose.msra.mxu0 0
        %393 = vmatprep.subr.bf16.mxu0 0
        %394 = vmatpush1.bf16.xpose.msra.mxu0 0
        %395 = vmatprep.subr.bf16.mxu0 0
        %396 = vmatpush1.bf16.xpose.msra.mxu0 0
        %397 = vmatprep.subr.bf16.mxu0 0
        %398 = vmatpush1.bf16.xpose.msra.mxu0 0
        %399 = vmatprep.subr.bf16.mxu0 0
        %400 = vmatpush1.bf16.xpose.msra.mxu0 0
        %401 = vmatprep.subr.bf16.mxu0 0
        %402 = vmatpush1.bf16.xpose.msra.mxu0 0
        %403 = vmatprep.subr.bf16.mxu0 0
        %404 = vmatpush1.bf16.xpose.msra.mxu0 0
        %405 = vmatprep.subr.bf16.mxu0 0
        %406 = vmatpush1.bf16.xpose.msra.mxu0 0
        %407 = vmatprep.mubr.bf16.mxu0 0
        %408 = vmatmul.mubr.bf16.gmra.mrb[0].mxu0 %v370
        %v409 = vpop.f32.mrb[0].mxu0
        %v410 = vadd.f32 0.0, %v409
        %v411 = vpop.f32.mrb[0].mxu0
        %v412 = vpop.f32.mrb[0].mxu0
        %v413 = vpop.f32.mrb[0].mxu0
        %414 = vdwg.mxu0
        %vm415 = vcmask 64512
        %v416 = vsel %vm415, %v410, -inf
        %417 = vmax.xlane.f32.xlu0 %v416
        %v418 = vpop.xlane.xlu0 %417
        %v419 = vsub.f32 %v410, %v418
        %v420 = vmul.f32 %v419, 1.442695
        %v421 = vpow.pop %v420
        %v422 = vsel %vm415, %v421, 0.0
        %423 = vadd.xlane.f32.xlu0 %v422
        %v424 = vpop.xlane.xlu0 %423
        %v425 = vrcp.pop %v424
        %v426 = vmul.f32 %v421, %v425
        %v427 = vpack.c.bf16 %v426, %v426
        %428 = vrot.lane.b32.xlu0 %v365, 64
        %v429 = vpop.permute.xlu0 %428
        %v431 = vsel %vm415, %v427, 0
        %vm433 = vcmask 1043456
        %v435 = vsel %vm433, %v429, 0
        %437 = vmatprep.subr.bf16.mxu0 0
        %438 = vmatpush1.bf16.msra.mxu0 %v435
        %439 = vmatprep.subr.bf16.mxu0 0
        %440 = vmatpush1.bf16.msra.mxu0 0
        %441 = vmatprep.subr.bf16.mxu0 0
        %442 = vmatpush1.bf16.msra.mxu0 0
        %443 = vmatprep.subr.bf16.mxu0 0
        %444 = vmatpush1.bf16.msra.mxu0 0
        %445 = vmatprep.subr.bf16.mxu0 0
        %446 = vmatpush1.bf16.msra.mxu0 0
        %447 = vmatprep.subr.bf16.mxu0 0
        %448 = vmatpush1.bf16.msra.mxu0 0
        %449 = vmatprep.subr.bf16.mxu0 0
        %450 = vmatpush1.bf16.msra.mxu0 0
        %451 = vmatprep.subr.bf16.mxu0 0
        %452 = vmatpush1.bf16.msra.mxu0 0
        %453 = vmatprep.subr.bf16.mxu0 0
        %454 = vmatpush1.bf16.msra.mxu0 0
        %455 = vmatprep.subr.bf16.mxu0 0
        %456 = vmatpush1.bf16.msra.mxu0 0
        %457 = vmatprep.subr.bf16.mxu0 0
        %458 = vmatpush1.bf16.msra.mxu0 0
        %459 = vmatprep.subr.bf16.mxu0 0
        %460 = vmatpush1.bf16.msra.mxu0 0
        %461 = vmatprep.subr.bf16.mxu0 0
        %462 = vmatpush1.bf16.msra.mxu0 0
        %463 = vmatprep.subr.bf16.mxu0 0
        %464 = vmatpush1.bf16.msra.mxu0 0
        %465 = vmatprep.subr.bf16.mxu0 0
        %466 = vmatpush1.bf16.msra.mxu0 0
        %467 = vmatprep.subr.bf16.mxu0 0
        %468 = vmatpush1.bf16.msra.mxu0 0
        %469 = vmatprep.mubr.bf16.mxu0 0
        %470 = vmatmul.mubr.bf16.gmra.mrb[0].mxu0 %v431
        %v471 = vpop.f32.mrb[0].mxu0
        %v472 = vadd.f32 0.0, %v471
        %v473 = vpop.f32.mrb[0].mxu0
        %v474 = vpop.f32.mrb[0].mxu0
        %v475 = vpop.f32.mrb[0].mxu0
        %476 = vdwg.mxu0
        %v477 = vpack.c.bf16 %v472, %v472
        %vm478 = vcmask 27648
        %479 = vst.msk [vmem:[%s254] sm:$0xf] %vm478, %v477
        %v480 = vld [vmem:[#allocation2] sm:$0xf]
        %v482 = vunpack.c.l.b16 %v480
        %v483 = vpack.c.b16 %v482, %v482
        %484 = vrot.lane.b32.xlu0 %v483, 124
        %v485 = vpop.permute.xlu0 %484
        %486 = vrot.lane.b32.xlu0 %v483, 92
        %v487 = vpop.permute.xlu0 %486
        %v489 = vsel %vm368, %v485, 0
        %v492 = vsel %vm368, %v487, 0
        %494 = vmatprep.subr.bf16.mxu0 0
        %495 = vmatpush1.bf16.xpose.msra.mxu0 %v492
        %496 = vmatprep.subr.bf16.mxu0 0
        %497 = vmatpush1.bf16.xpose.msra.mxu0 0
        %498 = vmatprep.subr.bf16.mxu0 0
        %499 = vmatpush1.bf16.xpose.msra.mxu0 0
        %500 = vmatprep.subr.bf16.mxu0 0
        %501 = vmatpush1.bf16.xpose.msra.mxu0 0
        %502 = vmatprep.subr.bf16.mxu0 0
        %503 = vmatpush1.bf16.xpose.msra.mxu0 0
        %504 = vmatprep.subr.bf16.mxu0 0
        %505 = vmatpush1.bf16.xpose.msra.mxu0 0
        %506 = vmatprep.subr.bf16.mxu0 0
        %507 = vmatpush1.bf16.xpose.msra.mxu0 0
        %508 = vmatprep.subr.bf16.mxu0 0
        %509 = vmatpush1.bf16.xpose.msra.mxu0 0
        %510 = vmatprep.subr.bf16.mxu0 0
        %511 = vmatpush1.bf16.xpose.msra.mxu0 0
        %512 = vmatprep.subr.bf16.mxu0 0
        %513 = vmatpush1.bf16.xpose.msra.mxu0 0
        %514 = vmatprep.subr.bf16.mxu0 0
        %515 = vmatpush1.bf16.xpose.msra.mxu0 0
        %516 = vmatprep.subr.bf16.mxu0 0
        %517 = vmatpush1.bf16.xpose.msra.mxu0 0
        %518 = vmatprep.subr.bf16.mxu0 0
        %519 = vmatpush1.bf16.xpose.msra.mxu0 0
        %520 = vmatprep.subr.bf16.mxu0 0
        %521 = vmatpush1.bf16.xpose.msra.mxu0 0
        %522 = vmatprep.subr.bf16.mxu0 0
        %523 = vmatpush1.bf16.xpose.msra.mxu0 0
        %524 = vmatprep.subr.bf16.mxu0 0
        %525 = vmatpush1.bf16.xpose.msra.mxu0 0
        %526 = vmatprep.mubr.bf16.mxu0 0
        %527 = vmatmul.mubr.bf16.gmra.mrb[0].mxu0 %v489
        %v528 = vpop.f32.mrb[0].mxu0
        %v529 = vadd.f32 0.0, %v528
        %v530 = vpop.f32.mrb[0].mxu0
        %v531 = vpop.f32.mrb[0].mxu0
        %v532 = vpop.f32.mrb[0].mxu0
        %533 = vdwg.mxu0
        %v534 = vsel %vm415, %v529, -inf
        %535 = vmax.xlane.f32.xlu0 %v534
        %v536 = vpop.xlane.xlu0 %535
        %v537 = vsub.f32 %v529, %v536
        %v538 = vmul.f32 %v537, 1.442695
        %v539 = vpow.pop %v538
        %v540 = vsel %vm415, %v539, 0.0
        %541 = vadd.xlane.f32.xlu0 %v540
        %v542 = vpop.xlane.xlu0 %541
        %v543 = vrcp.pop %v542
        %v544 = vmul.f32 %v539, %v543
        %v545 = vpack.c.bf16 %v544, %v544
        %546 = vrot.lane.b32.xlu0 %v483, 60
        %v547 = vpop.permute.xlu0 %546
        %v549 = vsel %vm415, %v545, 0
        %v552 = vsel %vm433, %v547, 0
        %554 = vmatprep.subr.bf16.mxu0 0
        %555 = vmatpush1.bf16.msra.mxu0 %v552
        %556 = vmatprep.subr.bf16.mxu0 0
        %557 = vmatpush1.bf16.msra.mxu0 0
        %558 = vmatprep.subr.bf16.mxu0 0
        %559 = vmatpush1.bf16.msra.mxu0 0
        %560 = vmatprep.subr.bf16.mxu0 0
        %561 = vmatpush1.bf16.msra.mxu0 0
        %562 = vmatprep.subr.bf16.mxu0 0
        %563 = vmatpush1.bf16.msra.mxu0 0
        %564 = vmatprep.subr.bf16.mxu0 0
        %565 = vmatpush1.bf16.msra.mxu0 0
        %566 = vmatprep.subr.bf16.mxu0 0
        %567 = vmatpush1.bf16.msra.mxu0 0
        %568 = vmatprep.subr.bf16.mxu0 0
        %569 = vmatpush1.bf16.msra.mxu0 0
        %570 = vmatprep.subr.bf16.mxu0 0
        %571 = vmatpush1.bf16.msra.mxu0 0
        %572 = vmatprep.subr.bf16.mxu0 0
        %573 = vmatpush1.bf16.msra.mxu0 0
        %574 = vmatprep.subr.bf16.mxu0 0
        %575 = vmatpush1.bf16.msra.mxu0 0
        %576 = vmatprep.subr.bf16.mxu0 0
        %577 = vmatpush1.bf16.msra.mxu0 0
        %578 = vmatprep.subr.bf16.mxu0 0
        %579 = vmatpush1.bf16.msra.mxu0 0
        %580 = vmatprep.subr.bf16.mxu0 0
        %581 = vmatpush1.bf16.msra.mxu0 0
        %582 = vmatprep.subr.bf16.mxu0 0
        %583 = vmatpush1.bf16.msra.mxu0 0
        %584 = vmatprep.subr.bf16.mxu0 0
        %585 = vmatpush1.bf16.msra.mxu0 0
        %586 = vmatprep.mubr.bf16.mxu0 0
        %587 = vmatmul.mubr.bf16.gmra.mrb[0].mxu0 %v549
        %v588 = vpop.f32.mrb[0].mxu0
        %v589 = vadd.f32 0.0, %v588
        %v590 = vpop.f32.mrb[0].mxu0
        %v591 = vpop.f32.mrb[0].mxu0
        %v592 = vpop.f32.mrb[0].mxu0
        %593 = vdwg.mxu0
        %v594 = vpack.c.bf16 %v589, %v589
        %v596 = vunpack.c.l.b16 %v594
        %v597 = vpack.c.b16 %v596, %v596
        %598 = vrot.lane.b32.xlu0 %v597, 4
        %v599 = vpop.permute.xlu0 %598
        %vm601 = vcmask 60448
        %602 = vst.msk [vmem:[%s254] sm:$0xf] %vm601, %v599
        %v603 = vld [vmem:[#allocation2] sm:$0xf]
        %v605 = vunpack.c.l.b16 %v603
        %v606 = vpack.c.b16 %v605, %v605
        %607 = vrot.lane.b32.xlu0 %v606, 120
        %v608 = vpop.permute.xlu0 %607
        %609 = vrot.lane.b32.xlu0 %v606, 88
        %v610 = vpop.permute.xlu0 %609
        %v612 = vsel %vm368, %v608, 0
        %v615 = vsel %vm368, %v610, 0
        %617 = vmatprep.subr.bf16.mxu0 0
        %618 = vmatpush1.bf16.xpose.msra.mxu0 %v615
        %619 = vmatprep.subr.bf16.mxu0 0
        %620 = vmatpush1.bf16.xpose.msra.mxu0 0
        %621 = vmatprep.subr.bf16.mxu0 0
        %622 = vmatpush1.bf16.xpose.msra.mxu0 0
        %623 = vmatprep.subr.bf16.mxu0 0
        %624 = vmatpush1.bf16.xpose.msra.mxu0 0
        %625 = vmatprep.subr.bf16.mxu0 0
        %626 = vmatpush1.bf16.xpose.msra.mxu0 0
        %627 = vmatprep.subr.bf16.mxu0 0
        %628 = vmatpush1.bf16.xpose.msra.mxu0 0
        %629 = vmatprep.subr.bf16.mxu0 0
        %630 = vmatpush1.bf16.xpose.msra.mxu0 0
        %631 = vmatprep.subr.bf16.mxu0 0
        %632 = vmatpush1.bf16.xpose.msra.mxu0 0
        %633 = vmatprep.subr.bf16.mxu0 0
        %634 = vmatpush1.bf16.xpose.msra.mxu0 0
        %635 = vmatprep.subr.bf16.mxu0 0
        %636 = vmatpush1.bf16.xpose.msra.mxu0 0
        %637 = vmatprep.subr.bf16.mxu0 0
        %638 = vmatpush1.bf16.xpose.msra.mxu0 0
        %639 = vmatprep.subr.bf16.mxu0 0
        %640 = vmatpush1.bf16.xpose.msra.mxu0 0
        %641 = vmatprep.subr.bf16.mxu0 0
        %642 = vmatpush1.bf16.xpose.msra.mxu0 0
        %643 = vmatprep.subr.bf16.mxu0 0
        %644 = vmatpush1.bf16.xpose.msra.mxu0 0
        %645 = vmatprep.subr.bf16.mxu0 0
        %646 = vmatpush1.bf16.xpose.msra.mxu0 0
        %647 = vmatprep.subr.bf16.mxu0 0
        %648 = vmatpush1.bf16.xpose.msra.mxu0 0
        %649 = vmatprep.mubr.bf16.mxu0 0
        %650 = vmatmul.mubr.bf16.gmra.mrb[0].mxu0 %v612
        %v651 = vpop.f32.mrb[0].mxu0
        %v652 = vadd.f32 0.0, %v651
        %v653 = vpop.f32.mrb[0].mxu0
        %v654 = vpop.f32.mrb[0].mxu0
        %v655 = vpop.f32.mrb[0].mxu0
        %656 = vdwg.mxu0
        %v657 = vsel %vm415, %v652, -inf
        %658 = vmax.xlane.f32.xlu0 %v657
        %v659 = vpop.xlane.xlu0 %658
        %v660 = vsub.f32 %v652, %v659
        %v661 = vmul.f32 %v660, 1.442695
        %v662 = vpow.pop %v661
        %v663 = vsel %vm415, %v662, 0.0
        %664 = vadd.xlane.f32.xlu0 %v663
        %v665 = vpop.xlane.xlu0 %664
        %v666 = vrcp.pop %v665
        %v667 = vmul.f32 %v662, %v666
        %v668 = vpack.c.bf16 %v667, %v667
        %669 = vrot.lane.b32.xlu0 %v606, 56
        %v670 = vpop.permute.xlu0 %669
        %v672 = vsel %vm415, %v668, 0
        %v675 = vsel %vm433, %v670, 0
        %677 = vmatprep.subr.bf16.mxu0 0
        %678 = vmatpush1.bf16.msra.mxu0 %v675
        %679 = vmatprep.subr.bf16.mxu0 0
        %680 = vmatpush1.bf16.msra.mxu0 0
        %681 = vmatprep.subr.bf16.mxu0 0
        %682 = vmatpush1.bf16.msra.mxu0 0
        %683 = vmatprep.subr.bf16.mxu0 0
        %684 = vmatpush1.bf16.msra.mxu0 0
        %685 = vmatprep.subr.bf16.mxu0 0
        %686 = vmatpush1.bf16.msra.mxu0 0
        %687 = vmatprep.subr.bf16.mxu0 0
        %688 = vmatpush1.bf16.msra.mxu0 0
        %689 = vmatprep.subr.bf16.mxu0 0
        %690 = vmatpush1.bf16.msra.mxu0 0
        %691 = vmatprep.subr.bf16.mxu0 0
        %692 = vmatpush1.bf16.msra.mxu0 0
        %693 = vmatprep.subr.bf16.mxu0 0
        %694 = vmatpush1.bf16.msra.mxu0 0
        %695 = vmatprep.subr.bf16.mxu0 0
        %696 = vmatpush1.bf16.msra.mxu0 0
        %697 = vmatprep.subr.bf16.mxu0 0
        %698 = vmatpush1.bf16.msra.mxu0 0
        %699 = vmatprep.subr.bf16.mxu0 0
        %700 = vmatpush1.bf16.msra.mxu0 0
        %701 = vmatprep.subr.bf16.mxu0 0
        %702 = vmatpush1.bf16.msra.mxu0 0
        %703 = vmatprep.subr.bf16.mxu0 0
        %704 = vmatpush1.bf16.msra.mxu0 0
        %705 = vmatprep.subr.bf16.mxu0 0
        %706 = vmatpush1.bf16.msra.mxu0 0
        %707 = vmatprep.subr.bf16.mxu0 0
        %708 = vmatpush1.bf16.msra.mxu0 0
        %709 = vmatprep.mubr.bf16.mxu0 0
        %710 = vmatmul.mubr.bf16.gmra.mrb[0].mxu0 %v672
        %v711 = vpop.f32.mrb[0].mxu0
        %v712 = vadd.f32 0.0, %v711
        %v713 = vpop.f32.mrb[0].mxu0
        %v714 = vpop.f32.mrb[0].mxu0
        %v715 = vpop.f32.mrb[0].mxu0
        %716 = vdwg.mxu0
        %v717 = vpack.c.bf16 %v712, %v712
        %v719 = vunpack.c.l.b16 %v717
        %v720 = vpack.c.b16 %v719, %v719
        %721 = vrot.lane.b32.xlu0 %v720, 8
        %v722 = vpop.permute.xlu0 %721
        %vm724 = vcmask 93248
        %725 = vst.msk [vmem:[%s254] sm:$0xf] %vm724, %v722
        %v726 = vld [vmem:[#allocation2] sm:$0xf]
        %v728 = vunpack.c.l.b16 %v726
        %v729 = vpack.c.b16 %v728, %v728
        %730 = vrot.lane.b32.xlu0 %v729, 116
        %v731 = vpop.permute.xlu0 %730
        %732 = vrot.lane.b32.xlu0 %v729, 84
        %v733 = vpop.permute.xlu0 %732
        %v735 = vsel %vm368, %v731, 0
        %v738 = vsel %vm368, %v733, 0
        %740 = vmatprep.subr.bf16.mxu0 0
        %741 = vmatpush1.bf16.xpose.msra.mxu0 %v738
        %742 = vmatprep.subr.bf16.mxu0 0
        %743 = vmatpush1.bf16.xpose.msra.mxu0 0
        %744 = vmatprep.subr.bf16.mxu0 0
        %745 = vmatpush1.bf16.xpose.msra.mxu0 0
        %746 = vmatprep.subr.bf16.mxu0 0
        %747 = vmatpush1.bf16.xpose.msra.mxu0 0
        %748 = vmatprep.subr.bf16.mxu0 0
        %749 = vmatpush1.bf16.xpose.msra.mxu0 0
        %750 = vmatprep.subr.bf16.mxu0 0
        %751 = vmatpush1.bf16.xpose.msra.mxu0 0
        %752 = vmatprep.subr.bf16.mxu0 0
        %753 = vmatpush1.bf16.xpose.msra.mxu0 0
        %754 = vmatprep.subr.bf16.mxu0 0
        %755 = vmatpush1.bf16.xpose.msra.mxu0 0
        %756 = vmatprep.subr.bf16.mxu0 0
        %757 = vmatpush1.bf16.xpose.msra.mxu0 0
        %758 = vmatprep.subr.bf16.mxu0 0
        %759 = vmatpush1.bf16.xpose.msra.mxu0 0
        %760 = vmatprep.subr.bf16.mxu0 0
        %761 = vmatpush1.bf16.xpose.msra.mxu0 0
        %762 = vmatprep.subr.bf16.mxu0 0
        %763 = vmatpush1.bf16.xpose.msra.mxu0 0
        %764 = vmatprep.subr.bf16.mxu0 0
        %765 = vmatpush1.bf16.xpose.msra.mxu0 0
        %766 = vmatprep.subr.bf16.mxu0 0
        %767 = vmatpush1.bf16.xpose.msra.mxu0 0
        %768 = vmatprep.subr.bf16.mxu0 0
        %769 = vmatpush1.bf16.xpose.msra.mxu0 0
        %770 = vmatprep.subr.bf16.mxu0 0
        %771 = vmatpush1.bf16.xpose.msra.mxu0 0
        %772 = vmatprep.mubr.bf16.mxu0 0
        %773 = vmatmul.mubr.bf16.gmra.mrb[0].mxu0 %v735
        %v774 = vpop.f32.mrb[0].mxu0
        %v775 = vadd.f32 0.0, %v774
        %v776 = vpop.f32.mrb[0].mxu0
        %v777 = vpop.f32.mrb[0].mxu0
        %v778 = vpop.f32.mrb[0].mxu0
        %779 = vdwg.mxu0
        %v780 = vsel %vm415, %v775, -inf
        %781 = vmax.xlane.f32.xlu0 %v780
        %v782 = vpop.xlane.xlu0 %781
        %v783 = vsub.f32 %v775, %v782
        %v784 = vmul.f32 %v783, 1.442695
        %v785 = vpow.pop %v784
        %v786 = vsel %vm415, %v785, 0.0
        %787 = vadd.xlane.f32.xlu0 %v786
        %v788 = vpop.xlane.xlu0 %787
        %v789 = vrcp.pop %v788
        %v790 = vmul.f32 %v785, %v789
        %v791 = vpack.c.bf16 %v790, %v790
        %792 = vrot.lane.b32.xlu0 %v729, 52
        %v793 = vpop.permute.xlu0 %792
        %v795 = vsel %vm415, %v791, 0
        %v798 = vsel %vm433, %v793, 0
        %800 = vmatprep.subr.bf16.mxu0 0
        %801 = vmatpush1.bf16.msra.mxu0 %v798
        %802 = vmatprep.subr.bf16.mxu0 0
        %803 = vmatpush1.bf16.msra.mxu0 0
        %804 = vmatprep.subr.bf16.mxu0 0
        %805 = vmatpush1.bf16.msra.mxu0 0
        %806 = vmatprep.subr.bf16.mxu0 0
        %807 = vmatpush1.bf16.msra.mxu0 0
        %808 = vmatprep.subr.bf16.mxu0 0
        %809 = vmatpush1.bf16.msra.mxu0 0
        %810 = vmatprep.subr.bf16.mxu0 0
        %811 = vmatpush1.bf16.msra.mxu0 0
        %812 = vmatprep.subr.bf16.mxu0 0
        %813 = vmatpush1.bf16.msra.mxu0 0
        %814 = vmatprep.subr.bf16.mxu0 0
        %815 = vmatpush1.bf16.msra.mxu0 0
        %816 = vmatprep.subr.bf16.mxu0 0
        %817 = vmatpush1.bf16.msra.mxu0 0
        %818 = vmatprep.subr.bf16.mxu0 0
        %819 = vmatpush1.bf16.msra.mxu0 0
        %820 = vmatprep.subr.bf16.mxu0 0
        %821 = vmatpush1.bf16.msra.mxu0 0
        %822 = vmatprep.subr.bf16.mxu0 0
        %823 = vmatpush1.bf16.msra.mxu0 0
        %824 = vmatprep.subr.bf16.mxu0 0
        %825 = vmatpush1.bf16.msra.mxu0 0
        %826 = vmatprep.subr.bf16.mxu0 0
        %827 = vmatpush1.bf16.msra.mxu0 0
        %828 = vmatprep.subr.bf16.mxu0 0
        %829 = vmatpush1.bf16.msra.mxu0 0
        %830 = vmatprep.subr.bf16.mxu0 0
        %831 = vmatpush1.bf16.msra.mxu0 0
        %832 = vmatprep.mubr.bf16.mxu0 0
        %833 = vmatmul.mubr.bf16.gmra.mrb[0].mxu0 %v795
        %v834 = vpop.f32.mrb[0].mxu0
        %v835 = vadd.f32 0.0, %v834
        %v836 = vpop.f32.mrb[0].mxu0
        %v837 = vpop.f32.mrb[0].mxu0
        %v838 = vpop.f32.mrb[0].mxu0
        %839 = vdwg.mxu0
        %v840 = vpack.c.bf16 %v835, %v835
        %v842 = vunpack.c.l.b16 %v840
        %v843 = vpack.c.b16 %v842, %v842
        %844 = vrot.lane.b32.xlu0 %v843, 12
        %v845 = vpop.permute.xlu0 %844
        %vm847 = vcmask 126048
        %848 = vst.msk [vmem:[%s254] sm:$0xf] %vm847, %v845
        %v849 = vld [vmem:[#allocation2] sm:$0xf]
        %v851 = vunpack.c.l.b16 %v849
        %v852 = vpack.c.b16 %v851, %v851
        %853 = vrot.lane.b32.xlu0 %v852, 112
        %v854 = vpop.permute.xlu0 %853
        %855 = vrot.lane.b32.xlu0 %v852, 80
        %v856 = vpop.permute.xlu0 %855
        %v858 = vsel %vm368, %v854, 0
        %v861 = vsel %vm368, %v856, 0
        %863 = vmatprep.subr.bf16.mxu0 0
        %864 = vmatpush1.bf16.xpose.msra.mxu0 %v861
        %865 = vmatprep.subr.bf16.mxu0 0
        %866 = vmatpush1.bf16.xpose.msra.mxu0 0
        %867 = vmatprep.subr.bf16.mxu0 0
        %868 = vmatpush1.bf16.xpose.msra.mxu0 0
        %869 = vmatprep.subr.bf16.mxu0 0
        %870 = vmatpush1.bf16.xpose.msra.mxu0 0
        %871 = vmatprep.subr.bf16.mxu0 0
        %872 = vmatpush1.bf16.xpose.msra.mxu0 0
        %873 = vmatprep.subr.bf16.mxu0 0
        %874 = vmatpush1.bf16.xpose.msra.mxu0 0
        %875 = vmatprep.subr.bf16.mxu0 0
        %876 = vmatpush1.bf16.xpose.msra.mxu0 0
        %877 = vmatprep.subr.bf16.mxu0 0
        %878 = vmatpush1.bf16.xpose.msra.mxu0 0
        %879 = vmatprep.subr.bf16.mxu0 0
        %880 = vmatpush1.bf16.xpose.msra.mxu0 0
        %881 = vmatprep.subr.bf16.mxu0 0
        %882 = vmatpush1.bf16.xpose.msra.mxu0 0
        %883 = vmatprep.subr.bf16.mxu0 0
        %884 = vmatpush1.bf16.xpose.msra.mxu0 0
        %885 = vmatprep.subr.bf16.mxu0 0
        %886 = vmatpush1.bf16.xpose.msra.mxu0 0
        %887 = vmatprep.subr.bf16.mxu0 0
        %888 = vmatpush1.bf16.xpose.msra.mxu0 0
        %889 = vmatprep.subr.bf16.mxu0 0
        %890 = vmatpush1.bf16.xpose.msra.mxu0 0
        %891 = vmatprep.subr.bf16.mxu0 0
        %892 = vmatpush1.bf16.xpose.msra.mxu0 0
        %893 = vmatprep.subr.bf16.mxu0 0
        %894 = vmatpush1.bf16.xpose.msra.mxu0 0
        %895 = vmatprep.mubr.bf16.mxu0 0
        %896 = vmatmul.mubr.bf16.gmra.mrb[0].mxu0 %v858
        %v897 = vpop.f32.mrb[0].mxu0
        %v898 = vadd.f32 0.0, %v897
        %v899 = vpop.f32.mrb[0].mxu0
        %v900 = vpop.f32.mrb[0].mxu0
        %v901 = vpop.f32.mrb[0].mxu0
        %902 = vdwg.mxu0
        %v903 = vsel %vm415, %v898, -inf
        %904 = vmax.xlane.f32.xlu0 %v903
        %v905 = vpop.xlane.xlu0 %904
        %v906 = vsub.f32 %v898, %v905
        %v907 = vmul.f32 %v906, 1.442695
        %v908 = vpow.pop %v907
        %v909 = vsel %vm415, %v908, 0.0
        %910 = vadd.xlane.f32.xlu0 %v909
        %v911 = vpop.xlane.xlu0 %910
        %v912 = vrcp.pop %v911
        %v913 = vmul.f32 %v908, %v912
        %v914 = vpack.c.bf16 %v913, %v913
        %915 = vrot.lane.b32.xlu0 %v852, 48
        %v916 = vpop.permute.xlu0 %915
        %v918 = vsel %vm415, %v914, 0
        %v921 = vsel %vm433, %v916, 0
        %923 = vmatprep.subr.bf16.mxu0 0
        %924 = vmatpush1.bf16.msra.mxu0 %v921
        %925 = vmatprep.subr.bf16.mxu0 0
        %926 = vmatpush1.bf16.msra.mxu0 0
        %927 = vmatprep.subr.bf16.mxu0 0
        %928 = vmatpush1.bf16.msra.mxu0 0
        %929 = vmatprep.subr.bf16.mxu0 0
        %930 = vmatpush1.bf16.msra.mxu0 0
        %931 = vmatprep.subr.bf16.mxu0 0
        %932 = vmatpush1.bf16.msra.mxu0 0
        %933 = vmatprep.subr.bf16.mxu0 0
        %934 = vmatpush1.bf16.msra.mxu0 0
        %935 = vmatprep.subr.bf16.mxu0 0
        %936 = vmatpush1.bf16.msra.mxu0 0
        %937 = vmatprep.subr.bf16.mxu0 0
        %938 = vmatpush1.bf16.msra.mxu0 0
        %939 = vmatprep.subr.bf16.mxu0 0
        %940 = vmatpush1.bf16.msra.mxu0 0
        %941 = vmatprep.subr.bf16.mxu0 0
        %942 = vmatpush1.bf16.msra.mxu0 0
        %943 = vmatprep.subr.bf16.mxu0 0
        %944 = vmatpush1.bf16.msra.mxu0 0
        %945 = vmatprep.subr.bf16.mxu0 0
        %946 = vmatpush1.bf16.msra.mxu0 0
        %947 = vmatprep.subr.bf16.mxu0 0
        %948 = vmatpush1.bf16.msra.mxu0 0
        %949 = vmatprep.subr.bf16.mxu0 0
        %950 = vmatpush1.bf16.msra.mxu0 0
        %951 = vmatprep.subr.bf16.mxu0 0
        %952 = vmatpush1.bf16.msra.mxu0 0
        %953 = vmatprep.subr.bf16.mxu0 0
        %954 = vmatpush1.bf16.msra.mxu0 0
        %955 = vmatprep.mubr.bf16.mxu0 0
        %956 = vmatmul.mubr.bf16.gmra.mrb[0].mxu0 %v918
        %v957 = vpop.f32.mrb[0].mxu0
        %v958 = vadd.f32 0.0, %v957
        %v959 = vpop.f32.mrb[0].mxu0
        %v960 = vpop.f32.mrb[0].mxu0
        %v961 = vpop.f32.mrb[0].mxu0
        %962 = vdwg.mxu0
        %v963 = vpack.c.bf16 %v958, %v958
        %v965 = vunpack.c.l.b16 %v963
        %v966 = vpack.c.b16 %v965, %v965
        %967 = vrot.lane.b32.xlu0 %v966, 16
        %v968 = vpop.permute.xlu0 %967
        %vm970 = vcmask 158848
        %971 = vst.msk [vmem:[%s254] sm:$0xf] %vm970, %v968
        %v972 = vld [vmem:[#allocation2] sm:$0xf]
        %v974 = vunpack.c.l.b16 %v972
        %v975 = vpack.c.b16 %v974, %v974
        %976 = vrot.lane.b32.xlu0 %v975, 108
        %v977 = vpop.permute.xlu0 %976
        %978 = vrot.lane.b32.xlu0 %v975, 76
        %v979 = vpop.permute.xlu0 %978
        %v981 = vsel %vm368, %v977, 0
        %v984 = vsel %vm368, %v979, 0
        %986 = vmatprep.subr.bf16.mxu0 0
        %987 = vmatpush1.bf16.xpose.msra.mxu0 %v984
        %988 = vmatprep.subr.bf16.mxu0 0
        %989 = vmatpush1.bf16.xpose.msra.mxu0 0
        %990 = vmatprep.subr.bf16.mxu0 0
        %991 = vmatpush1.bf16.xpose.msra.mxu0 0
        %992 = vmatprep.subr.bf16.mxu0 0
        %993 = vmatpush1.bf16.xpose.msra.mxu0 0
        %994 = vmatprep.subr.bf16.mxu0 0
        %995 = vmatpush1.bf16.xpose.msra.mxu0 0
        %996 = vmatprep.subr.bf16.mxu0 0
        %997 = vmatpush1.bf16.xpose.msra.mxu0 0
        %998 = vmatprep.subr.bf16.mxu0 0
        %999 = vmatpush1.bf16.xpose.msra.mxu0 0
        %1000 = vmatprep.subr.bf16.mxu0 0
        %1001 = vmatpush1.bf16.xpose.msra.mxu0 0
        %1002 = vmatprep.subr.bf16.mxu0 0
        %1003 = vmatpush1.bf16.xpose.msra.mxu0 0
        %1004 = vmatprep.subr.bf16.mxu0 0
        %1005 = vmatpush1.bf16.xpose.msra.mxu0 0
        %1006 = vmatprep.subr.bf16.mxu0 0
        %1007 = vmatpush1.bf16.xpose.msra.mxu0 0
        %1008 = vmatprep.subr.bf16.mxu0 0
        %1009 = vmatpush1.bf16.xpose.msra.mxu0 0
        %1010 = vmatprep.subr.bf16.mxu0 0
        %1011 = vmatpush1.bf16.xpose.msra.mxu0 0
        %1012 = vmatprep.subr.bf16.mxu0 0
        %1013 = vmatpush1.bf16.xpose.msra.mxu0 0
        %1014 = vmatprep.subr.bf16.mxu0 0
        %1015 = vmatpush1.bf16.xpose.msra.mxu0 0
        %1016 = vmatprep.subr.bf16.mxu0 0
        %1017 = vmatpush1.bf16.xpose.msra.mxu0 0
        %1018 = vmatprep.mubr.bf16.mxu0 0
        %1019 = vmatmul.mubr.bf16.gmra.mrb[0].mxu0 %v981
        %v1020 = vpop.f32.mrb[0].mxu0
        %v1021 = vadd.f32 0.0, %v1020
        %v1022 = vpop.f32.mrb[0].mxu0
        %v1023 = vpop.f32.mrb[0].mxu0
        %v1024 = vpop.f32.mrb[0].mxu0
        %1025 = vdwg.mxu0
        %v1026 = vsel %vm415, %v1021, -inf
        %1027 = vmax.xlane.f32.xlu0 %v1026
        %v1028 = vpop.xlane.xlu0 %1027
        %v1029 = vsub.f32 %v1021, %v1028
        %v1030 = vmul.f32 %v1029, 1.442695
        %v1031 = vpow.pop %v1030
        %v1032 = vsel %vm415, %v1031, 0.0
        %1033 = vadd.xlane.f32.xlu0 %v1032
        %v1034 = vpop.xlane.xlu0 %1033
        %v1035 = vrcp.pop %v1034
        %v1036 = vmul.f32 %v1031, %v1035
        %v1037 = vpack.c.bf16 %v1036, %v1036
        %1038 = vrot.lane.b32.xlu0 %v975, 44
        %v1039 = vpop.permute.xlu0 %1038
        %v1041 = vsel %vm415, %v1037, 0
        %v1044 = vsel %vm433, %v1039, 0
        %1046 = vmatprep.subr.bf16.mxu0 0
        %1047 = vmatpush1.bf16.msra.mxu0 %v1044
        %1048 = vmatprep.subr.bf16.mxu0 0
        %1049 = vmatpush1.bf16.msra.mxu0 0
        %1050 = vmatprep.subr.bf16.mxu0 0
        %1051 = vmatpush1.bf16.msra.mxu0 0
        %1052 = vmatprep.subr.bf16.mxu0 0
        %1053 = vmatpush1.bf16.msra.mxu0 0
        %1054 = vmatprep.subr.bf16.mxu0 0
        %1055 = vmatpush1.bf16.msra.mxu0 0
        %1056 = vmatprep.subr.bf16.mxu0 0
        %1057 = vmatpush1.bf16.msra.mxu0 0
        %1058 = vmatprep.subr.bf16.mxu0 0
        %1059 = vmatpush1.bf16.msra.mxu0 0
        %1060 = vmatprep.subr.bf16.mxu0 0
        %1061 = vmatpush1.bf16.msra.mxu0 0
        %1062 = vmatprep.subr.bf16.mxu0 0
        %1063 = vmatpush1.bf16.msra.mxu0 0
        %1064 = vmatprep.subr.bf16.mxu0 0
        %1065 = vmatpush1.bf16.msra.mxu0 0
        %1066 = vmatprep.subr.bf16.mxu0 0
        %1067 = vmatpush1.bf16.msra.mxu0 0
        %1068 = vmatprep.subr.bf16.mxu0 0
        %1069 = vmatpush1.bf16.msra.mxu0 0
        %1070 = vmatprep.subr.bf16.mxu0 0
        %1071 = vmatpush1.bf16.msra.mxu0 0
        %1072 = vmatprep.subr.bf16.mxu0 0
        %1073 = vmatpush1.bf16.msra.mxu0 0
        %1074 = vmatprep.subr.bf16.mxu0 0
        %1075 = vmatpush1.bf16.msra.mxu0 0
        %1076 = vmatprep.subr.bf16.mxu0 0
        %1077 = vmatpush1.bf16.msra.mxu0 0
        %1078 = vmatprep.mubr.bf16.mxu0 0
        %1079 = vmatmul.mubr.bf16.gmra.mrb[0].mxu0 %v1041
        %v1080 = vpop.f32.mrb[0].mxu0
        %v1081 = vadd.f32 0.0, %v1080
        %v1082 = vpop.f32.mrb[0].mxu0
        %v1083 = vpop.f32.mrb[0].mxu0
        %v1084 = vpop.f32.mrb[0].mxu0
        %1085 = vdwg.mxu0
        %v1086 = vpack.c.bf16 %v1081, %v1081
        %v1088 = vunpack.c.l.b16 %v1086
        %v1089 = vpack.c.b16 %v1088, %v1088
        %1090 = vrot.lane.b32.xlu0 %v1089, 20
        %v1091 = vpop.permute.xlu0 %1090
        %vm1093 = vcmask 191648
        %1094 = vst.msk [vmem:[%s254] sm:$0xf] %vm1093, %v1091
        %v1095 = vld [vmem:[#allocation2] sm:$0xf]
        %v1097 = vunpack.c.l.b16 %v1095
        %v1098 = vpack.c.b16 %v1097, %v1097
        %1099 = vrot.lane.b32.xlu0 %v1098, 104
        %v1100 = vpop.permute.xlu0 %1099
        %1101 = vrot.lane.b32.xlu0 %v1098, 72
        %v1102 = vpop.permute.xlu0 %1101
        %v1104 = vsel %vm368, %v1100, 0
        %v1107 = vsel %vm368, %v1102, 0
        %1109 = vmatprep.subr.bf16.mxu0 0
        %1110 = vmatpush1.bf16.xpose.msra.mxu0 %v1107
        %1111 = vmatprep.subr.bf16.mxu0 0
        %1112 = vmatpush1.bf16.xpose.msra.mxu0 0
        %1113 = vmatprep.subr.bf16.mxu0 0
        %1114 = vmatpush1.bf16.xpose.msra.mxu0 0
        %1115 = vmatprep.subr.bf16.mxu0 0
        %1116 = vmatpush1.bf16.xpose.msra.mxu0 0
        %1117 = vmatprep.subr.bf16.mxu0 0
        %1118 = vmatpush1.bf16.xpose.msra.mxu0 0
        %1119 = vmatprep.subr.bf16.mxu0 0
        %1120 = vmatpush1.bf16.xpose.msra.mxu0 0
        %1121 = vmatprep.subr.bf16.mxu0 0
        %1122 = vmatpush1.bf16.xpose.msra.mxu0 0
        %1123 = vmatprep.subr.bf16.mxu0 0
        %1124 = vmatpush1.bf16.xpose.msra.mxu0 0
        %1125 = vmatprep.subr.bf16.mxu0 0
        %1126 = vmatpush1.bf16.xpose.msra.mxu0 0
        %1127 = vmatprep.subr.bf16.mxu0 0
        %1128 = vmatpush1.bf16.xpose.msra.mxu0 0
        %1129 = vmatprep.subr.bf16.mxu0 0
        %1130 = vmatpush1.bf16.xpose.msra.mxu0 0
        %1131 = vmatprep.subr.bf16.mxu0 0
        %1132 = vmatpush1.bf16.xpose.msra.mxu0 0
        %1133 = vmatprep.subr.bf16.mxu0 0
        %1134 = vmatpush1.bf16.xpose.msra.mxu0 0
        %1135 = vmatprep.subr.bf16.mxu0 0
        %1136 = vmatpush1.bf16.xpose.msra.mxu0 0
        %1137 = vmatprep.subr.bf16.mxu0 0
        %1138 = vmatpush1.bf16.xpose.msra.mxu0 0
        %1139 = vmatprep.subr.bf16.mxu0 0
        %1140 = vmatpush1.bf16.xpose.msra.mxu0 0
        %1141 = vmatprep.mubr.bf16.mxu0 0
        %1142 = vmatmul.mubr.bf16.gmra.mrb[0].mxu0 %v1104
        %v1143 = vpop.f32.mrb[0].mxu0
        %v1144 = vadd.f32 0.0, %v1143
        %v1145 = vpop.f32.mrb[0].mxu0
        %v1146 = vpop.f32.mrb[0].mxu0
        %v1147 = vpop.f32.mrb[0].mxu0
        %1148 = vdwg.mxu0
        %v1149 = vsel %vm415, %v1144, -inf
        %1150 = vmax.xlane.f32.xlu0 %v1149
        %v1151 = vpop.xlane.xlu0 %1150
        %v1152 = vsub.f32 %v1144, %v1151
        %v1153 = vmul.f32 %v1152, 1.442695
        %v1154 = vpow.pop %v1153
        %v1155 = vsel %vm415, %v1154, 0.0
        %1156 = vadd.xlane.f32.xlu0 %v1155
        %v1157 = vpop.xlane.xlu0 %1156
        %v1158 = vrcp.pop %v1157
        %v1159 = vmul.f32 %v1154, %v1158
        %v1160 = vpack.c.bf16 %v1159, %v1159
        %1161 = vrot.lane.b32.xlu0 %v1098, 40
        %v1162 = vpop.permute.xlu0 %1161
        %v1164 = vsel %vm415, %v1160, 0
        %v1167 = vsel %vm433, %v1162, 0
        %1169 = vmatprep.subr.bf16.mxu0 0
        %1170 = vmatpush1.bf16.msra.mxu0 %v1167
        %1171 = vmatprep.subr.bf16.mxu0 0
        %1172 = vmatpush1.bf16.msra.mxu0 0
        %1173 = vmatprep.subr.bf16.mxu0 0
        %1174 = vmatpush1.bf16.msra.mxu0 0
        %1175 = vmatprep.subr.bf16.mxu0 0
        %1176 = vmatpush1.bf16.msra.mxu0 0
        %1177 = vmatprep.subr.bf16.mxu0 0
        %1178 = vmatpush1.bf16.msra.mxu0 0
        %1179 = vmatprep.subr.bf16.mxu0 0
        %1180 = vmatpush1.bf16.msra.mxu0 0
        %1181 = vmatprep.subr.bf16.mxu0 0
        %1182 = vmatpush1.bf16.msra.mxu0 0
        %1183 = vmatprep.subr.bf16.mxu0 0
        %1184 = vmatpush1.bf16.msra.mxu0 0
        %1185 = vmatprep.subr.bf16.mxu0 0
        %1186 = vmatpush1.bf16.msra.mxu0 0
        %1187 = vmatprep.subr.bf16.mxu0 0
        %1188 = vmatpush1.bf16.msra.mxu0 0
        %1189 = vmatprep.subr.bf16.mxu0 0
        %1190 = vmatpush1.bf16.msra.mxu0 0
        %1191 = vmatprep.subr.bf16.mxu0 0
        %1192 = vmatpush1.bf16.msra.mxu0 0
        %1193 = vmatprep.subr.bf16.mxu0 0
        %1194 = vmatpush1.bf16.msra.mxu0 0
        %1195 = vmatprep.subr.bf16.mxu0 0
        %1196 = vmatpush1.bf16.msra.mxu0 0
        %1197 = vmatprep.subr.bf16.mxu0 0
        %1198 = vmatpush1.bf16.msra.mxu0 0
        %1199 = vmatprep.subr.bf16.mxu0 0
        %1200 = vmatpush1.bf16.msra.mxu0 0
        %1201 = vmatprep.mubr.bf16.mxu0 0
        %1202 = vmatmul.mubr.bf16.gmra.mrb[0].mxu0 %v1164
        %v1203 = vpop.f32.mrb[0].mxu0
        %v1204 = vadd.f32 0.0, %v1203
        %v1205 = vpop.f32.mrb[0].mxu0
        %v1206 = vpop.f32.mrb[0].mxu0
        %v1207 = vpop.f32.mrb[0].mxu0
        %1208 = vdwg.mxu0
        %v1209 = vpack.c.bf16 %v1204, %v1204
        %v1211 = vunpack.c.l.b16 %v1209
        %v1212 = vpack.c.b16 %v1211, %v1211
        %1213 = vrot.lane.b32.xlu0 %v1212, 24
        %v1214 = vpop.permute.xlu0 %1213
        %vm1216 = vcmask 224448
        %1217 = vst.msk [vmem:[%s254] sm:$0xf] %vm1216, %v1214
        %v1218 = vld [vmem:[#allocation2] sm:$0xf]
        %v1220 = vunpack.c.l.b16 %v1218
        %v1221 = vpack.c.b16 %v1220, %v1220
        %1222 = vrot.lane.b32.xlu0 %v1221, 100
        %v1223 = vpop.permute.xlu0 %1222
        %1224 = vrot.lane.b32.xlu0 %v1221, 68
        %v1225 = vpop.permute.xlu0 %1224
        %v1227 = vsel %vm368, %v1223, 0
        %v1230 = vsel %vm368, %v1225, 0
        %1232 = vmatprep.subr.bf16.mxu0 0
        %1233 = vmatpush1.bf16.xpose.msra.mxu0 %v1230
        %1234 = vmatprep.subr.bf16.mxu0 0
        %1235 = vmatpush1.bf16.xpose.msra.mxu0 0
        %1236 = vmatprep.subr.bf16.mxu0 0
        %1237 = vmatpush1.bf16.xpose.msra.mxu0 0
        %1238 = vmatprep.subr.bf16.mxu0 0
        %1239 = vmatpush1.bf16.xpose.msra.mxu0 0
        %1240 = vmatprep.subr.bf16.mxu0 0
        %1241 = vmatpush1.bf16.xpose.msra.mxu0 0
        %1242 = vmatprep.subr.bf16.mxu0 0
        %1243 = vmatpush1.bf16.xpose.msra.mxu0 0
        %1244 = vmatprep.subr.bf16.mxu0 0
        %1245 = vmatpush1.bf16.xpose.msra.mxu0 0
        %1246 = vmatprep.subr.bf16.mxu0 0
        %1247 = vmatpush1.bf16.xpose.msra.mxu0 0
        %1248 = vmatprep.subr.bf16.mxu0 0
        %1249 = vmatpush1.bf16.xpose.msra.mxu0 0
        %1250 = vmatprep.subr.bf16.mxu0 0
        %1251 = vmatpush1.bf16.xpose.msra.mxu0 0
        %1252 = vmatprep.subr.bf16.mxu0 0
        %1253 = vmatpush1.bf16.xpose.msra.mxu0 0
        %1254 = vmatprep.subr.bf16.mxu0 0
        %1255 = vmatpush1.bf16.xpose.msra.mxu0 0
        %1256 = vmatprep.subr.bf16.mxu0 0
        %1257 = vmatpush1.bf16.xpose.msra.mxu0 0
        %1258 = vmatprep.subr.bf16.mxu0 0
        %1259 = vmatpush1.bf16.xpose.msra.mxu0 0
        %1260 = vmatprep.subr.bf16.mxu0 0
        %1261 = vmatpush1.bf16.xpose.msra.mxu0 0
        %1262 = vmatprep.subr.bf16.mxu0 0
        %1263 = vmatpush1.bf16.xpose.msra.mxu0 0
        %1264 = vmatprep.mubr.bf16.mxu0 0
        %1265 = vmatmul.mubr.bf16.gmra.mrb[0].mxu0 %v1227
        %v1266 = vpop.f32.mrb[0].mxu0
        %v1267 = vadd.f32 0.0, %v1266
        %v1268 = vpop.f32.mrb[0].mxu0
        %v1269 = vpop.f32.mrb[0].mxu0
        %v1270 = vpop.f32.mrb[0].mxu0
        %1271 = vdwg.mxu0
        %v1272 = vsel %vm415, %v1267, -inf
        %1273 = vmax.xlane.f32.xlu0 %v1272
        %v1274 = vpop.xlane.xlu0 %1273
        %v1275 = vsub.f32 %v1267, %v1274
        %v1276 = vmul.f32 %v1275, 1.442695
        %v1277 = vpow.pop %v1276
        %v1278 = vsel %vm415, %v1277, 0.0
        %1279 = vadd.xlane.f32.xlu0 %v1278
        %v1280 = vpop.xlane.xlu0 %1279
        %v1281 = vrcp.pop %v1280
        %v1282 = vmul.f32 %v1277, %v1281
        %v1283 = vpack.c.bf16 %v1282, %v1282
        %1284 = vrot.lane.b32.xlu0 %v1221, 36
        %v1285 = vpop.permute.xlu0 %1284
        %v1287 = vsel %vm415, %v1283, 0
        %v1290 = vsel %vm433, %v1285, 0
        %1292 = vmatprep.subr.bf16.mxu0 0
        %1293 = vmatpush1.bf16.msra.mxu0 %v1290
        %1294 = vmatprep.subr.bf16.mxu0 0
        %1295 = vmatpush1.bf16.msra.mxu0 0
        %1296 = vmatprep.subr.bf16.mxu0 0
        %1297 = vmatpush1.bf16.msra.mxu0 0
        %1298 = vmatprep.subr.bf16.mxu0 0
        %1299 = vmatpush1.bf16.msra.mxu0 0
        %1300 = vmatprep.subr.bf16.mxu0 0
        %1301 = vmatpush1.bf16.msra.mxu0 0
        %1302 = vmatprep.subr.bf16.mxu0 0
        %1303 = vmatpush1.bf16.msra.mxu0 0
        %1304 = vmatprep.subr.bf16.mxu0 0
        %1305 = vmatpush1.bf16.msra.mxu0 0
        %1306 = vmatprep.subr.bf16.mxu0 0
        %1307 = vmatpush1.bf16.msra.mxu0 0
        %1308 = vmatprep.subr.bf16.mxu0 0
        %1309 = vmatpush1.bf16.msra.mxu0 0
        %1310 = vmatprep.subr.bf16.mxu0 0
        %1311 = vmatpush1.bf16.msra.mxu0 0
        %1312 = vmatprep.subr.bf16.mxu0 0
        %1313 = vmatpush1.bf16.msra.mxu0 0
        %1314 = vmatprep.subr.bf16.mxu0 0
        %1315 = vmatpush1.bf16.msra.mxu0 0
        %1316 = vmatprep.subr.bf16.mxu0 0
        %1317 = vmatpush1.bf16.msra.mxu0 0
        %1318 = vmatprep.subr.bf16.mxu0 0
        %1319 = vmatpush1.bf16.msra.mxu0 0
        %1320 = vmatprep.subr.bf16.mxu0 0
        %1321 = vmatpush1.bf16.msra.mxu0 0
        %1322 = vmatprep.subr.bf16.mxu0 0
        %1323 = vmatpush1.bf16.msra.mxu0 0
        %1324 = vmatprep.mubr.bf16.mxu0 0
        %1325 = vmatmul.mubr.bf16.gmra.mrb[0].mxu0 %v1287
        %v1326 = vpop.f32.mrb[0].mxu0
        %v1327 = vadd.f32 0.0, %v1326
        %v1328 = vpop.f32.mrb[0].mxu0
        %v1329 = vpop.f32.mrb[0].mxu0
        %v1330 = vpop.f32.mrb[0].mxu0
        %1331 = vdwg.mxu0
        %v1332 = vpack.c.bf16 %v1327, %v1327
        %v1334 = vunpack.c.l.b16 %v1332
        %v1335 = vpack.c.b16 %v1334, %v1334
        %1336 = vrot.lane.b32.xlu0 %v1335, 28
        %v1337 = vpop.permute.xlu0 %1336
        %vm1339 = vcmask 257248
        %1340 = vst.msk [vmem:[%s254] sm:$0xf] %vm1339, %v1337
        %s1341 = sand.u32 %s141, 1
        %s1342 = scalar_lea.sflag [#allocation5], %s1341
        %s1343 = sand.u32 %s141, 1
        %s1344 = smul.addr %s1343, 4
        %s1345 = scalar_lea.vmem [#allocation8], %s1344
        // Predicated region
        $region49: #{tpu_custom_call.1} parent=39 // pred_check
          %p1346 = pneg %p151
        $region50: #{tpu_custom_call.1} parent=39 // pred_check_branch
          %1348 = sbr.rel (%p1346) target = $region52
        $region51: #{tpu_custom_call.1} parent=39 // pred_region
          %s1350 = ssub.s32 64, 64
          %1351 = vsyncadd %s1342, %s1350
          %s1352 = smul.addr %s23, 64
          %s1353 = scalar_lea.hbm %s5, %s1352
          %s1355 = sshll.u32 %s1345, 4
          %s1356 = int_to_ptr.vmem [resolvable:$true] %s1355
          %1358 = dma.vmem_to_hbm [thread:$0]  %s1356, 64, %s1353, %s1342
        $region52: #{tpu_custom_call.1} parent=39 // pred_fallthru
          _
      $region40: #{tpu_custom_call.1} parent=5 // pred_fallthru
        _
      %p1359 = scmp.le.s32.totalorder 2, %s18
      // Predicated region
      $region53: #{tpu_custom_call.1} parent=5 // pred_check
        %p1360 = pneg %p1359
      $region54: #{tpu_custom_call.1} parent=5 // pred_check_branch
        %1362 = sbr.rel (%p1360) target = $region56
      $region55: #{tpu_custom_call.1} parent=5 // pred_region
        %s1363 = ssub.s32 %s18, 2
        // Predicated region
        $region57: #{tpu_custom_call.1} parent=55 // pred_check
          %p1364 = pneg %p157
        $region58: #{tpu_custom_call.1} parent=55 // pred_check_branch
          %1366 = sbr.rel (%p1364) target = $region60
        $region59: #{tpu_custom_call.1} parent=55 // pred_region
          %s1367 = sand.u32 %s142, 1
          %s1368 = scalar_lea.sflag [#allocation5], %s1367
          %s1369 = sand.u32 %s142, 1
          %s1370 = smul.addr %s1369, 4
          %s1371 = scalar_lea.vmem [#allocation8], %s1370
          %1372 = dma.done %s1368, 64
        $region60: #{tpu_custom_call.1} parent=55 // pred_fallthru
          _
      $region56: #{tpu_custom_call.1} parent=5 // pred_fallthru
        _
    $region6: #{tpu_custom_call.1} parent=1 // loop_footer
      %s22 = sadd.s32 1, %s18
    $region7: #{tpu_custom_call.1} parent=1 // loop_footer_branch
      %17 = sbr.rel target = $region3
    $region8: #{tpu_custom_call.1} parent=1 // loop_exit
      _
    %1373 = vsyncpa [#allocation4], 1
    %s1374 = scalar_lea.sflag [#allocation4], 1
    %1375 = vsyncpa %s1374, 1
    %1376 = vsyncpa [#allocation7], 1
    %1377 = vsyncpa [#allocation5], 1
    %s1378 = scalar_lea.sflag [#allocation5], 1
    %1379 = vsyncpa %s1378, 1

</llo_original>
